<compile_context>
chip_gen: v6e
topology: v6e:2x2x1
jax: 0.10.0
libtpu: 0.0.40
codegen_flags: <defaults>
</compile_context>

<pallas_src>
import jax
import jax.numpy as jnp
from jax.experimental import pallas as pl
from jax.experimental.pallas import tpu as pltpu

# Small, lane-dense stand-in shapes for StyleFormer(1024, num_layers=6).
D_MODEL = 128
N_HEADS = 4
D_FF = 4 * D_MODEL
N_LAYERS = 6
EPS = 1e-5


def _stack_kernel(x_ref, wqkv_ref, bqkv_ref, wo_ref, bo_ref,
                  g1_ref, b1_ref, w1_ref, bf1_ref, w2_ref, bf2_ref,
                  g2_ref, b2_ref, out_ref, act_ref):
    """All N_LAYERS post-norm encoder layers for one batch element.

    Grid is (batch, layer); the layer axis is the innermost ("arbitrary")
    axis and the activation lives in `act_ref` (f32 VMEM) across it.
    """
    layer = pl.program_id(1)
    n_layers = pl.num_programs(1)

    S, D = act_ref.shape
    H = N_HEADS
    dk = D // H
    scale = 1.0 / float(dk) ** 0.5

    # Load the input activation from HBM only once (first layer).
    @pl.when(layer == 0)
    def _():
        act_ref[...] = x_ref[0]

    x = act_ref[...]                                   # (S, D) f32, resident
    x_bf = x.astype(jnp.bfloat16)

    # ---- multi-head self attention -------------------------------------
    qkv = jnp.dot(x_bf, wqkv_ref[0],
                  preferred_element_type=jnp.float32) + bqkv_ref[0]  # (S, 3D)

    wo = wo_ref[0]                                     # (D, D) bf16
    attn = jnp.zeros((S, D), jnp.float32)
    for h in range(H):                                 # static unroll, H small
        lo = h * dk
        qh = qkv[:, 0 * D + lo:0 * D + lo + dk].astype(jnp.bfloat16)  # (S, dk)
        kh = qkv[:, 1 * D + lo:1 * D + lo + dk].astype(jnp.bfloat16)
        vh = qkv[:, 2 * D + lo:2 * D + lo + dk].astype(jnp.bfloat16)

        # Contract dk (lane axis of both operands) -> (S, S) scores in f32.
        s = jax.lax.dot_general(qh, kh, (((1,), (1,)), ((), ())),
                                preferred_element_type=jnp.float32) * scale
        s = s - jnp.max(s, axis=-1, keepdims=True)
        p = jnp.exp(s)
        p = p * pl.reciprocal(jnp.sum(p, axis=-1, keepdims=True), approx=True)

        oh = jnp.dot(p.astype(jnp.bfloat16), vh,
                     preferred_element_type=jnp.float32)              # (S, dk)
        # Fold the output projection per head: attn += oh @ wo[lo:lo+dk, :]
        attn = attn + jnp.dot(oh.astype(jnp.bfloat16), wo[lo:lo + dk, :],
                              preferred_element_type=jnp.float32)
    attn = attn + bo_ref[0]

    # ---- residual + layernorm 1 (f32) -----------------------------------
    y = x + attn
    mu = jnp.mean(y, axis=-1, keepdims=True)
    var = jnp.mean((y - mu) ** 2, axis=-1, keepdims=True)
    y = (y - mu) * jax.lax.rsqrt(var + EPS) * g1_ref[0] + b1_ref[0]

    # ---- feed-forward (bf16 matmuls, f32 accumulate) ---------------------
    h1 = jnp.dot(y.astype(jnp.bfloat16), w1_ref[0],
                 preferred_element_type=jnp.float32) + bf1_ref[0]
    h1 = jnp.maximum(h1, 0.0)
    f = jnp.dot(h1.astype(jnp.bfloat16), w2_ref[0],
                preferred_element_type=jnp.float32) + bf2_ref[0]

    # ---- residual + layernorm 2 (f32) -----------------------------------
    z = y + f
    mu2 = jnp.mean(z, axis=-1, keepdims=True)
    var2 = jnp.mean((z - mu2) ** 2, axis=-1, keepdims=True)
    z = (z - mu2) * jax.lax.rsqrt(var2 + EPS) * g2_ref[0] + b2_ref[0]

    act_ref[...] = z

    # Single lane-dense HBM write per batch element, at the last layer.
    @pl.when(layer == n_layers - 1)
    def _():
        out_ref[0] = z


def trans_discriminator_forward(x, params):
    """x: (B, S, D) f32; params: dict of [L, ...]-stacked arrays."""
    B, S, D = x.shape
    L = params["wqkv"].shape[0]

    def w_spec(shape):
        # Per-layer block (1, *shape[1:]) selected by the layer grid axis.
        nz = (0,) * (len(shape) - 1)
        return pl.BlockSpec((1,) + shape[1:], lambda b, l, _nz=nz: (l,) + _nz)

    weight_args = (
        params["wqkv"], params["bqkv"], params["wo"], params["bo"],
        params["ln1_g"], params["ln1_b"],
        params["w1"], params["b1"], params["w2"], params["b2"],
        params["ln2_g"], params["ln2_b"],
    )

    in_specs = [pl.BlockSpec((1, S, D), lambda b, l: (b, 0, 0))]
    in_specs += [w_spec(w.shape) for w in weight_args]

    return pl.pallas_call(
        _stack_kernel,
        out_shape=jax.ShapeDtypeStruct((B, S, D), jnp.float32),
        grid_spec=pltpu.PrefetchScalarGridSpec(
            num_scalar_prefetch=0,
            grid=(B, L),
            in_specs=in_specs,
            out_specs=pl.BlockSpec((1, S, D), lambda b, l: (b, 0, 0)),
            scratch_shapes=[pltpu.VMEM((S, D), jnp.float32)],
        ),
        compiler_params=pltpu.CompilerParams(
            dimension_semantics=("parallel", "arbitrary"),
            # Headroom for bf16 weight double-buffering; re-derive (and tile
            # the FFN contraction / flash-tile attention) before scaling to the
            # real d_model=1024 on v7x's 64 MiB VMEM.
            vmem_limit_bytes=48 * 1024 * 1024,
        ),
    )(x, *weight_args)


def init_params(key, num_layers=N_LAYERS, d=D_MODEL, dff=D_FF):
    ks = jax.random.split(key, 12)
    L = num_layers

    def w(k, shape, scale=0.02):
        return (scale * jax.random.normal(k, shape, jnp.float32)).astype(jnp.bfloat16)

    def b(k, shape, scale=0.02):
        return scale * jax.random.normal(k, shape, jnp.float32)

    return {
        "wqkv":  w(ks[0], (L, d, 3 * d)),
        "bqkv":  b(ks[1], (L, 1, 3 * d)),
        "wo":    w(ks[2], (L, d, d)),
        "bo":    b(ks[3], (L, 1, d)),
        "ln1_g": 1.0 + b(ks[4], (L, 1, d), 0.05),
        "ln1_b": b(ks[5], (L, 1, d), 0.05),
        "w1":    w(ks[6], (L, d, dff)),
        "b1":    b(ks[7], (L, 1, dff)),
        "w2":    w(ks[8], (L, dff, d)),
        "b2":    b(ks[9], (L, 1, d)),
        "ln2_g": 1.0 + b(ks[10], (L, 1, d), 0.05),
        "ln2_b": b(ks[11], (L, 1, d), 0.05),
    }


def _reference_forward(x, p):
    """Pure-JAX reference mirroring the kernel's bf16-matmul / f32-accumulate math."""
    B, S, D = x.shape
    H, dk = N_HEADS, D // N_HEADS
    L = p["wqkv"].shape[0]
    scale = 1.0 / float(dk) ** 0.5
    bf, f32 = jnp.bfloat16, jnp.float32
    for l in range(L):
        qkv = jnp.einsum("bsd,df->bsf", x.astype(bf), p["wqkv"][l],
                         preferred_element_type=f32) + p["bqkv"][l]
        q = qkv[..., 0 * D:1 * D].reshape(B, S, H, dk)
        k = qkv[..., 1 * D:2 * D].reshape(B, S, H, dk)
        v = qkv[..., 2 * D:3 * D].reshape(B, S, H, dk)
        s = jnp.einsum("bqhd,bkhd->bhqk", q.astype(bf), k.astype(bf),
                       preferred_element_type=f32) * scale
        pr = jax.nn.softmax(s, axis=-1)
        o = jnp.einsum("bhqk,bkhd->bqhd", pr.astype(bf), v.astype(bf),
                       preferred_element_type=f32).reshape(B, S, D)
        o = jnp.einsum("bsd,de->bse", o.astype(bf), p["wo"][l],
                       preferred_element_type=f32) + p["bo"][l]
        y = x + o
        mu = jnp.mean(y, -1, keepdims=True)
        var = jnp.mean((y - mu) ** 2, -1, keepdims=True)
        y = (y - mu) * jax.lax.rsqrt(var + EPS) * p["ln1_g"][l] + p["ln1_b"][l]
        h = jnp.einsum("bsd,df->bsf", y.astype(bf), p["w1"][l],
                       preferred_element_type=f32) + p["b1"][l]
        h = jnp.maximum(h, 0.0)
        f = jnp.einsum("bsf,fd->bsd", h.astype(bf), p["w2"][l],
                       preferred_element_type=f32) + p["b2"][l]
        z = y + f
        mu2 = jnp.mean(z, -1, keepdims=True)
        var2 = jnp.mean((z - mu2) ** 2, -1, keepdims=True)
        x = (z - mu2) * jax.lax.rsqrt(var2 + EPS) * p["ln2_g"][l] + p["ln2_b"][l]
    return x


if __name__ == "__main__":
    key = jax.random.PRNGKey(0)
    k_in, k_par = jax.random.split(key)

    B, S = 2, 16
    x = jax.random.normal(k_in, (B, S, D_MODEL), jnp.float32)
    params = init_params(k_par)

    out = jax.block_until_ready(trans_discriminator_forward(x, params))
    assert out.shape == (B, S, D_MODEL)

    # Correctness check (tolerance covers bf16 matmuls + approx reciprocal).
    ref = _reference_forward(x, params)
    err = float(jnp.max(jnp.abs(out - ref)))
    assert err < 3e-2, f"mismatch vs reference: max abs err {err}"

    print("KERNEL_OK")
</pallas_src>

<mosaic_0001>
module attributes {stable_mosaic.version = 11 : i64} {
  func.func @_stack_kernel(%arg0: i32, %arg1: i32, %arg2: memref<1x16x128xf32, #tpu.memory_space<vmem>>, %arg3: memref<1x128x384xbf16, #tpu.memory_space<vmem>>, %arg4: memref<1x1x384xf32, #tpu.memory_space<vmem>>, %arg5: memref<1x128x128xbf16, #tpu.memory_space<vmem>>, %arg6: memref<1x1x128xf32, #tpu.memory_space<vmem>>, %arg7: memref<1x1x128xf32, #tpu.memory_space<vmem>>, %arg8: memref<1x1x128xf32, #tpu.memory_space<vmem>>, %arg9: memref<1x128x512xbf16, #tpu.memory_space<vmem>>, %arg10: memref<1x1x512xf32, #tpu.memory_space<vmem>>, %arg11: memref<1x512x128xbf16, #tpu.memory_space<vmem>>, %arg12: memref<1x1x128xf32, #tpu.memory_space<vmem>>, %arg13: memref<1x1x128xf32, #tpu.memory_space<vmem>>, %arg14: memref<1x1x128xf32, #tpu.memory_space<vmem>>, %arg15: memref<1x16x128xf32, #tpu.memory_space<vmem>>, %arg16: memref<16x128xf32, #tpu.memory_space<vmem>>) attributes {dimension_semantics = [#tpu.dimension_semantics<parallel>, #tpu.dimension_semantics<arbitrary>], iteration_bounds = array<i64: 2, 6>, scalar_prefetch = 0 : i64, scratch_operands = 1 : i64, tpu.core_type = #tpu.core_type<tc>, window_params = [{transform_indices = @transform_0, window_bounds = array<i64: 1, 16, 128>}, {transform_indices = @transform_1, window_bounds = array<i64: 1, 128, 384>}, {transform_indices = @transform_2, window_bounds = array<i64: 1, 1, 384>}, {transform_indices = @transform_3, window_bounds = array<i64: 1, 128, 128>}, {transform_indices = @transform_4, window_bounds = array<i64: 1, 1, 128>}, {transform_indices = @transform_5, window_bounds = array<i64: 1, 1, 128>}, {transform_indices = @transform_6, window_bounds = array<i64: 1, 1, 128>}, {transform_indices = @transform_7, window_bounds = array<i64: 1, 128, 512>}, {transform_indices = @transform_8, window_bounds = array<i64: 1, 1, 512>}, {transform_indices = @transform_9, window_bounds = array<i64: 1, 512, 128>}, {transform_indices = @transform_10, window_bounds = array<i64: 1, 1, 128>}, {transform_indices = @transform_11, window_bounds = array<i64: 1, 1, 128>}, {transform_indices = @transform_12, window_bounds = array<i64: 1, 1, 128>}, {transform_indices = @transform_13, window_bounds = array<i64: 1, 16, 128>}]} {
    %c0_i32 = arith.constant 0 : i32
    %0 = arith.cmpi eq, %arg1, %c0_i32 : i32
    %1 = arith.extui %0 : i1 to i32
    %c0_i32_0 = arith.constant 0 : i32
    %2 = arith.cmpi ne, %1, %c0_i32_0 : i32
    scf.if %2 {
      %c0_79 = arith.constant 0 : index
      %c0_80 = arith.constant 0 : index
      %c0_81 = arith.constant 0 : index
      %195 = vector.load %arg2[%c0_79, %c0_80, %c0_81] : memref<1x16x128xf32, #tpu.memory_space<vmem>>, vector<1x16x128xf32>
      %196 = vector.shape_cast %195 : vector<1x16x128xf32> to vector<16x128xf32>
      %c0_82 = arith.constant 0 : index
      %c0_83 = arith.constant 0 : index
      %197 = vector.load %arg16[%c0_82, %c0_83] : memref<16x128xf32, #tpu.memory_space<vmem>>, vector<16x128xf32>
      tpu.vector_store %arg16[%c0_82, %c0_83], %196 {strides = array<i32>} : memref<16x128xf32, #tpu.memory_space<vmem>>, vector<16x128xf32>,
    } else {
    }
    %c0 = arith.constant 0 : index
    %c0_1 = arith.constant 0 : index
    %3 = vector.load %arg16[%c0, %c0_1] : memref<16x128xf32, #tpu.memory_space<vmem>>, vector<16x128xf32>
    %4 = arith.truncf %3 : vector<16x128xf32> to vector<16x128xbf16>
    %c0_2 = arith.constant 0 : index
    %c0_3 = arith.constant 0 : index
    %c0_4 = arith.constant 0 : index
    %5 = vector.load %arg3[%c0_2, %c0_3, %c0_4] : memref<1x128x384xbf16, #tpu.memory_space<vmem>>, vector<1x128x384xbf16>
    %6 = vector.shape_cast %5 : vector<1x128x384xbf16> to vector<128x384xbf16>
    %cst = arith.constant dense<0.000000e+00> : vector<16x384xf32>
    %7 = tpu.matmul %4, %6, %cst {dimension_numbers = #tpu.dot_dimension_numbers<[1], [0], [0], [1], [0, 0, 1, 1], [], []>} : vector<16x128xbf16>, vector<128x384xbf16>, vector<16x384xf32> -> vector<16x384xf32>
    %c0_5 = arith.constant 0 : index
    %c0_6 = arith.constant 0 : index
    %c0_7 = arith.constant 0 : index
    %8 = vector.load %arg4[%c0_5, %c0_6, %c0_7] : memref<1x1x384xf32, #tpu.memory_space<vmem>>, vector<1x1x384xf32>
    %9 = vector.shape_cast %8 : vector<1x1x384xf32> to vector<1x384xf32>
    %10 = vector.broadcast %9 : vector<1x384xf32> to vector<16x384xf32>
    %11 = arith.addf %7, %10 : vector<16x384xf32>
    %c0_8 = arith.constant 0 : index
    %c0_9 = arith.constant 0 : index
    %c0_10 = arith.constant 0 : index
    %12 = vector.load %arg5[%c0_8, %c0_9, %c0_10] : memref<1x128x128xbf16, #tpu.memory_space<vmem>>, vector<1x128x128xbf16>
    %13 = vector.shape_cast %12 : vector<1x128x128xbf16> to vector<128x128xbf16>
    %cst_11 = arith.constant 0.000000e+00 : f32
    %14 = vector.broadcast %cst_11 : f32 to vector<16x128xf32>
    %15 = vector.extract_strided_slice %11 {offsets = [0, 0], sizes = [16, 32], strides = [1, 1]} : vector<16x384xf32> to vector<16x32xf32>
    %16 = arith.truncf %15 : vector<16x32xf32> to vector<16x32xbf16>
    %17 = vector.extract_strided_slice %11 {offsets = [0, 128], sizes = [16, 32], strides = [1, 1]} : vector<16x384xf32> to vector<16x32xf32>
    %18 = arith.truncf %17 : vector<16x32xf32> to vector<16x32xbf16>
    %19 = vector.extract_strided_slice %11 {offsets = [0, 256], sizes = [16, 32], strides = [1, 1]} : vector<16x384xf32> to vector<16x32xf32>
    %20 = arith.truncf %19 : vector<16x32xf32> to vector<16x32xbf16>
    %cst_12 = arith.constant dense<0.000000e+00> : vector<16x16xf32>
    %21 = tpu.matmul %16, %18, %cst_12 {dimension_numbers = #tpu.dot_dimension_numbers<[1], [1], [0], [0], [0, 0, 1, 0], [], []>} : vector<16x32xbf16>, vector<16x32xbf16>, vector<16x16xf32> -> vector<16x16xf32>
    %cst_13 = arith.constant 0.176776692 : f32
    %22 = vector.broadcast %cst_13 : f32 to vector<16x16xf32>
    %23 = arith.mulf %21, %22 : vector<16x16xf32>
    %cst_14 = arith.constant dense<0xFF800000> : vector<16xf32>
    %24 = vector.multi_reduction <maximumf>, %23, %cst_14 [1] : vector<16x16xf32> to vector<16xf32>
    %25 = vector.shape_cast %24 : vector<16xf32> to vector<16x1xf32>
    %26 = vector.broadcast %25 : vector<16x1xf32> to vector<16x16xf32>
    %27 = arith.subf %23, %26 : vector<16x16xf32>
    %28 = math.exp %27 : vector<16x16xf32>
    %cst_15 = arith.constant dense<0.000000e+00> : vector<16xf32>
    %29 = vector.multi_reduction <add>, %28, %cst_15 [1] : vector<16x16xf32> to vector<16xf32>
    %30 = vector.shape_cast %29 : vector<16xf32> to vector<16x1xf32>
    %31 = tpu.reciprocal %30 {approx = true} : vector<16x1xf32> -> vector<16x1xf32>
    %32 = vector.broadcast %31 : vector<16x1xf32> to vector<16x16xf32>
    %33 = arith.mulf %28, %32 : vector<16x16xf32>
    %34 = arith.truncf %33 : vector<16x16xf32> to vector<16x16xbf16>
    %cst_16 = arith.constant dense<0.000000e+00> : vector<16x32xf32>
    %35 = tpu.matmul %34, %20, %cst_16 {dimension_numbers = #tpu.dot_dimension_numbers<[1], [0], [0], [1], [0, 0, 1, 1], [], []>} : vector<16x16xbf16>, vector<16x32xbf16>, vector<16x32xf32> -> vector<16x32xf32>
    %36 = arith.truncf %35 : vector<16x32xf32> to vector<16x32xbf16>
    %37 = vector.extract_strided_slice %13 {offsets = [0, 0], sizes = [32, 128], strides = [1, 1]} : vector<128x128xbf16> to vector<32x128xbf16>
    %cst_17 = arith.constant dense<0.000000e+00> : vector<16x128xf32>
    %38 = tpu.matmul %36, %37, %cst_17 {dimension_numbers = #tpu.dot_dimension_numbers<[1], [0], [0], [1], [0, 0, 1, 1], [], []>} : vector<16x32xbf16>, vector<32x128xbf16>, vector<16x128xf32> -> vector<16x128xf32>
    %39 = arith.addf %14, %38 : vector<16x128xf32>
    %40 = vector.extract_strided_slice %11 {offsets = [0, 32], sizes = [16, 32], strides = [1, 1]} : vector<16x384xf32> to vector<16x32xf32>
    %41 = arith.truncf %40 : vector<16x32xf32> to vector<16x32xbf16>
    %42 = vector.extract_strided_slice %11 {offsets = [0, 160], sizes = [16, 32], strides = [1, 1]} : vector<16x384xf32> to vector<16x32xf32>
    %43 = arith.truncf %42 : vector<16x32xf32> to vector<16x32xbf16>
    %44 = vector.extract_strided_slice %11 {offsets = [0, 288], sizes = [16, 32], strides = [1, 1]} : vector<16x384xf32> to vector<16x32xf32>
    %45 = arith.truncf %44 : vector<16x32xf32> to vector<16x32xbf16>
    %cst_18 = arith.constant dense<0.000000e+00> : vector<16x16xf32>
    %46 = tpu.matmul %41, %43, %cst_18 {dimension_numbers = #tpu.dot_dimension_numbers<[1], [1], [0], [0], [0, 0, 1, 0], [], []>} : vector<16x32xbf16>, vector<16x32xbf16>, vector<16x16xf32> -> vector<16x16xf32>
    %cst_19 = arith.constant 0.176776692 : f32
    %47 = vector.broadcast %cst_19 : f32 to vector<16x16xf32>
    %48 = arith.mulf %46, %47 : vector<16x16xf32>
    %cst_20 = arith.constant dense<0xFF800000> : vector<16xf32>
    %49 = vector.multi_reduction <maximumf>, %48, %cst_20 [1] : vector<16x16xf32> to vector<16xf32>
    %50 = vector.shape_cast %49 : vector<16xf32> to vector<16x1xf32>
    %51 = vector.broadcast %50 : vector<16x1xf32> to vector<16x16xf32>
    %52 = arith.subf %48, %51 : vector<16x16xf32>
    %53 = math.exp %52 : vector<16x16xf32>
    %cst_21 = arith.constant dense<0.000000e+00> : vector<16xf32>
    %54 = vector.multi_reduction <add>, %53, %cst_21 [1] : vector<16x16xf32> to vector<16xf32>
    %55 = vector.shape_cast %54 : vector<16xf32> to vector<16x1xf32>
    %56 = tpu.reciprocal %55 {approx = true} : vector<16x1xf32> -> vector<16x1xf32>
    %57 = vector.broadcast %56 : vector<16x1xf32> to vector<16x16xf32>
    %58 = arith.mulf %53, %57 : vector<16x16xf32>
    %59 = arith.truncf %58 : vector<16x16xf32> to vector<16x16xbf16>
    %cst_22 = arith.constant dense<0.000000e+00> : vector<16x32xf32>
    %60 = tpu.matmul %59, %45, %cst_22 {dimension_numbers = #tpu.dot_dimension_numbers<[1], [0], [0], [1], [0, 0, 1, 1], [], []>} : vector<16x16xbf16>, vector<16x32xbf16>, vector<16x32xf32> -> vector<16x32xf32>
    %61 = arith.truncf %60 : vector<16x32xf32> to vector<16x32xbf16>
    %62 = vector.extract_strided_slice %13 {offsets = [32, 0], sizes = [32, 128], strides = [1, 1]} : vector<128x128xbf16> to vector<32x128xbf16>
    %cst_23 = arith.constant dense<0.000000e+00> : vector<16x128xf32>
    %63 = tpu.matmul %61, %62, %cst_23 {dimension_numbers = #tpu.dot_dimension_numbers<[1], [0], [0], [1], [0, 0, 1, 1], [], []>} : vector<16x32xbf16>, vector<32x128xbf16>, vector<16x128xf32> -> vector<16x128xf32>
    %64 = arith.addf %39, %63 : vector<16x128xf32>
    %65 = vector.extract_strided_slice %11 {offsets = [0, 64], sizes = [16, 32], strides = [1, 1]} : vector<16x384xf32> to vector<16x32xf32>
    %66 = arith.truncf %65 : vector<16x32xf32> to vector<16x32xbf16>
    %67 = vector.extract_strided_slice %11 {offsets = [0, 192], sizes = [16, 32], strides = [1, 1]} : vector<16x384xf32> to vector<16x32xf32>
    %68 = arith.truncf %67 : vector<16x32xf32> to vector<16x32xbf16>
    %69 = vector.extract_strided_slice %11 {offsets = [0, 320], sizes = [16, 32], strides = [1, 1]} : vector<16x384xf32> to vector<16x32xf32>
    %70 = arith.truncf %69 : vector<16x32xf32> to vector<16x32xbf16>
    %cst_24 = arith.constant dense<0.000000e+00> : vector<16x16xf32>
    %71 = tpu.matmul %66, %68, %cst_24 {dimension_numbers = #tpu.dot_dimension_numbers<[1], [1], [0], [0], [0, 0, 1, 0], [], []>} : vector<16x32xbf16>, vector<16x32xbf16>, vector<16x16xf32> -> vector<16x16xf32>
    %cst_25 = arith.constant 0.176776692 : f32
    %72 = vector.broadcast %cst_25 : f32 to vector<16x16xf32>
    %73 = arith.mulf %71, %72 : vector<16x16xf32>
    %cst_26 = arith.constant dense<0xFF800000> : vector<16xf32>
    %74 = vector.multi_reduction <maximumf>, %73, %cst_26 [1] : vector<16x16xf32> to vector<16xf32>
    %75 = vector.shape_cast %74 : vector<16xf32> to vector<16x1xf32>
    %76 = vector.broadcast %75 : vector<16x1xf32> to vector<16x16xf32>
    %77 = arith.subf %73, %76 : vector<16x16xf32>
    %78 = math.exp %77 : vector<16x16xf32>
    %cst_27 = arith.constant dense<0.000000e+00> : vector<16xf32>
    %79 = vector.multi_reduction <add>, %78, %cst_27 [1] : vector<16x16xf32> to vector<16xf32>
    %80 = vector.shape_cast %79 : vector<16xf32> to vector<16x1xf32>
    %81 = tpu.reciprocal %80 {approx = true} : vector<16x1xf32> -> vector<16x1xf32>
    %82 = vector.broadcast %81 : vector<16x1xf32> to vector<16x16xf32>
    %83 = arith.mulf %78, %82 : vector<16x16xf32>
    %84 = arith.truncf %83 : vector<16x16xf32> to vector<16x16xbf16>
    %cst_28 = arith.constant dense<0.000000e+00> : vector<16x32xf32>
    %85 = tpu.matmul %84, %70, %cst_28 {dimension_numbers = #tpu.dot_dimension_numbers<[1], [0], [0], [1], [0, 0, 1, 1], [], []>} : vector<16x16xbf16>, vector<16x32xbf16>, vector<16x32xf32> -> vector<16x32xf32>
    %86 = arith.truncf %85 : vector<16x32xf32> to vector<16x32xbf16>
    %87 = vector.extract_strided_slice %13 {offsets = [64, 0], sizes = [32, 128], strides = [1, 1]} : vector<128x128xbf16> to vector<32x128xbf16>
    %cst_29 = arith.constant dense<0.000000e+00> : vector<16x128xf32>
    %88 = tpu.matmul %86, %87, %cst_29 {dimension_numbers = #tpu.dot_dimension_numbers<[1], [0], [0], [1], [0, 0, 1, 1], [], []>} : vector<16x32xbf16>, vector<32x128xbf16>, vector<16x128xf32> -> vector<16x128xf32>
    %89 = arith.addf %64, %88 : vector<16x128xf32>
    %90 = vector.extract_strided_slice %11 {offsets = [0, 96], sizes = [16, 32], strides = [1, 1]} : vector<16x384xf32> to vector<16x32xf32>
    %91 = arith.truncf %90 : vector<16x32xf32> to vector<16x32xbf16>
    %92 = vector.extract_strided_slice %11 {offsets = [0, 224], sizes = [16, 32], strides = [1, 1]} : vector<16x384xf32> to vector<16x32xf32>
    %93 = arith.truncf %92 : vector<16x32xf32> to vector<16x32xbf16>
    %94 = vector.extract_strided_slice %11 {offsets = [0, 352], sizes = [16, 32], strides = [1, 1]} : vector<16x384xf32> to vector<16x32xf32>
    %95 = arith.truncf %94 : vector<16x32xf32> to vector<16x32xbf16>
    %cst_30 = arith.constant dense<0.000000e+00> : vector<16x16xf32>
    %96 = tpu.matmul %91, %93, %cst_30 {dimension_numbers = #tpu.dot_dimension_numbers<[1], [1], [0], [0], [0, 0, 1, 0], [], []>} : vector<16x32xbf16>, vector<16x32xbf16>, vector<16x16xf32> -> vector<16x16xf32>
    %cst_31 = arith.constant 0.176776692 : f32
    %97 = vector.broadcast %cst_31 : f32 to vector<16x16xf32>
    %98 = arith.mulf %96, %97 : vector<16x16xf32>
    %cst_32 = arith.constant dense<0xFF800000> : vector<16xf32>
    %99 = vector.multi_reduction <maximumf>, %98, %cst_32 [1] : vector<16x16xf32> to vector<16xf32>
    %100 = vector.shape_cast %99 : vector<16xf32> to vector<16x1xf32>
    %101 = vector.broadcast %100 : vector<16x1xf32> to vector<16x16xf32>
    %102 = arith.subf %98, %101 : vector<16x16xf32>
    %103 = math.exp %102 : vector<16x16xf32>
    %cst_33 = arith.constant dense<0.000000e+00> : vector<16xf32>
    %104 = vector.multi_reduction <add>, %103, %cst_33 [1] : vector<16x16xf32> to vector<16xf32>
    %105 = vector.shape_cast %104 : vector<16xf32> to vector<16x1xf32>
    %106 = tpu.reciprocal %105 {approx = true} : vector<16x1xf32> -> vector<16x1xf32>
    %107 = vector.broadcast %106 : vector<16x1xf32> to vector<16x16xf32>
    %108 = arith.mulf %103, %107 : vector<16x16xf32>
    %109 = arith.truncf %108 : vector<16x16xf32> to vector<16x16xbf16>
    %cst_34 = arith.constant dense<0.000000e+00> : vector<16x32xf32>
    %110 = tpu.matmul %109, %95, %cst_34 {dimension_numbers = #tpu.dot_dimension_numbers<[1], [0], [0], [1], [0, 0, 1, 1], [], []>} : vector<16x16xbf16>, vector<16x32xbf16>, vector<16x32xf32> -> vector<16x32xf32>
    %111 = arith.truncf %110 : vector<16x32xf32> to vector<16x32xbf16>
    %112 = vector.extract_strided_slice %13 {offsets = [96, 0], sizes = [32, 128], strides = [1, 1]} : vector<128x128xbf16> to vector<32x128xbf16>
    %cst_35 = arith.constant dense<0.000000e+00> : vector<16x128xf32>
    %113 = tpu.matmul %111, %112, %cst_35 {dimension_numbers = #tpu.dot_dimension_numbers<[1], [0], [0], [1], [0, 0, 1, 1], [], []>} : vector<16x32xbf16>, vector<32x128xbf16>, vector<16x128xf32> -> vector<16x128xf32>
    %114 = arith.addf %89, %113 : vector<16x128xf32>
    %c0_36 = arith.constant 0 : index
    %c0_37 = arith.constant 0 : index
    %c0_38 = arith.constant 0 : index
    %115 = vector.load %arg6[%c0_36, %c0_37, %c0_38] : memref<1x1x128xf32, #tpu.memory_space<vmem>>, vector<1x1x128xf32>
    %116 = vector.shape_cast %115 : vector<1x1x128xf32> to vector<1x128xf32>
    %117 = vector.broadcast %116 : vector<1x128xf32> to vector<16x128xf32>
    %118 = arith.addf %114, %117 : vector<16x128xf32>
    %119 = arith.addf %3, %118 : vector<16x128xf32>
    %cst_39 = arith.constant dense<0.000000e+00> : vector<16xf32>
    %120 = vector.multi_reduction <add>, %119, %cst_39 [1] : vector<16x128xf32> to vector<16xf32>
    %121 = vector.shape_cast %120 : vector<16xf32> to vector<16x1xf32>
    %cst_40 = arith.constant 1.280000e+02 : f32
    %122 = vector.broadcast %cst_40 : f32 to vector<16x1xf32>
    %123 = arith.divf %121, %122 : vector<16x1xf32>
    %124 = vector.broadcast %123 : vector<16x1xf32> to vector<16x128xf32>
    %125 = arith.subf %119, %124 : vector<16x128xf32>
    %126 = arith.mulf %125, %125 : vector<16x128xf32>
    %cst_41 = arith.constant dense<0.000000e+00> : vector<16xf32>
    %127 = vector.multi_reduction <add>, %126, %cst_41 [1] : vector<16x128xf32> to vector<16xf32>
    %128 = vector.shape_cast %127 : vector<16xf32> to vector<16x1xf32>
    %cst_42 = arith.constant 1.280000e+02 : f32
    %129 = vector.broadcast %cst_42 : f32 to vector<16x1xf32>
    %130 = arith.divf %128, %129 : vector<16x1xf32>
    %131 = vector.broadcast %123 : vector<16x1xf32> to vector<16x128xf32>
    %132 = arith.subf %119, %131 : vector<16x128xf32>
    %cst_43 = arith.constant 9.99999974E-6 : f32
    %133 = vector.broadcast %cst_43 : f32 to vector<16x1xf32>
    %134 = arith.addf %130, %133 : vector<16x1xf32>
    %135 = math.rsqrt %134 : vector<16x1xf32>
    %136 = vector.broadcast %135 : vector<16x1xf32> to vector<16x128xf32>
    %137 = arith.mulf %132, %136 : vector<16x128xf32>
    %c0_44 = arith.constant 0 : index
    %c0_45 = arith.constant 0 : index
    %c0_46 = arith.constant 0 : index
    %138 = vector.load %arg7[%c0_44, %c0_45, %c0_46] : memref<1x1x128xf32, #tpu.memory_space<vmem>>, vector<1x1x128xf32>
    %139 = vector.shape_cast %138 : vector<1x1x128xf32> to vector<1x128xf32>
    %140 = vector.broadcast %139 : vector<1x128xf32> to vector<16x128xf32>
    %141 = arith.mulf %137, %140 : vector<16x128xf32>
    %c0_47 = arith.constant 0 : index
    %c0_48 = arith.constant 0 : index
    %c0_49 = arith.constant 0 : index
    %142 = vector.load %arg8[%c0_47, %c0_48, %c0_49] : memref<1x1x128xf32, #tpu.memory_space<vmem>>, vector<1x1x128xf32>
    %143 = vector.shape_cast %142 : vector<1x1x128xf32> to vector<1x128xf32>
    %144 = vector.broadcast %143 : vector<1x128xf32> to vector<16x128xf32>
    %145 = arith.addf %141, %144 : vector<16x128xf32>
    %146 = arith.truncf %145 : vector<16x128xf32> to vector<16x128xbf16>
    %c0_50 = arith.constant 0 : index
    %c0_51 = arith.constant 0 : index
    %c0_52 = arith.constant 0 : index
    %147 = vector.load %arg9[%c0_50, %c0_51, %c0_52] : memref<1x128x512xbf16, #tpu.memory_space<vmem>>, vector<1x128x512xbf16>
    %148 = vector.shape_cast %147 : vector<1x128x512xbf16> to vector<128x512xbf16>
    %cst_53 = arith.constant dense<0.000000e+00> : vector<16x512xf32>
    %149 = tpu.matmul %146, %148, %cst_53 {dimension_numbers = #tpu.dot_dimension_numbers<[1], [0], [0], [1], [0, 0, 1, 1], [], []>} : vector<16x128xbf16>, vector<128x512xbf16>, vector<16x512xf32> -> vector<16x512xf32>
    %c0_54 = arith.constant 0 : index
    %c0_55 = arith.constant 0 : index
    %c0_56 = arith.constant 0 : index
    %150 = vector.load %arg10[%c0_54, %c0_55, %c0_56] : memref<1x1x512xf32, #tpu.memory_space<vmem>>, vector<1x1x512xf32>
    %151 = vector.shape_cast %150 : vector<1x1x512xf32> to vector<1x512xf32>
    %152 = vector.broadcast %151 : vector<1x512xf32> to vector<16x512xf32>
    %153 = arith.addf %149, %152 : vector<16x512xf32>
    %cst_57 = arith.constant 0.000000e+00 : f32
    %154 = vector.broadcast %cst_57 : f32 to vector<16x512xf32>
    %155 = arith.maximumf %153, %154 : vector<16x512xf32>
    %156 = arith.truncf %155 : vector<16x512xf32> to vector<16x512xbf16>
    %c0_58 = arith.constant 0 : index
    %c0_59 = arith.constant 0 : index
    %c0_60 = arith.constant 0 : index
    %157 = vector.load %arg11[%c0_58, %c0_59, %c0_60] : memref<1x512x128xbf16, #tpu.memory_space<vmem>>, vector<1x512x128xbf16>
    %158 = vector.shape_cast %157 : vector<1x512x128xbf16> to vector<512x128xbf16>
    %cst_61 = arith.constant dense<0.000000e+00> : vector<16x128xf32>
    %159 = tpu.matmul %156, %158, %cst_61 {dimension_numbers = #tpu.dot_dimension_numbers<[1], [0], [0], [1], [0, 0, 1, 1], [], []>} : vector<16x512xbf16>, vector<512x128xbf16>, vector<16x128xf32> -> vector<16x128xf32>
    %c0_62 = arith.constant 0 : index
    %c0_63 = arith.constant 0 : index
    %c0_64 = arith.constant 0 : index
    %160 = vector.load %arg12[%c0_62, %c0_63, %c0_64] : memref<1x1x128xf32, #tpu.memory_space<vmem>>, vector<1x1x128xf32>
    %161 = vector.shape_cast %160 : vector<1x1x128xf32> to vector<1x128xf32>
    %162 = vector.broadcast %161 : vector<1x128xf32> to vector<16x128xf32>
    %163 = arith.addf %159, %162 : vector<16x128xf32>
    %164 = arith.addf %145, %163 : vector<16x128xf32>
    %cst_65 = arith.constant dense<0.000000e+00> : vector<16xf32>
    %165 = vector.multi_reduction <add>, %164, %cst_65 [1] : vector<16x128xf32> to vector<16xf32>
    %166 = vector.shape_cast %165 : vector<16xf32> to vector<16x1xf32>
    %cst_66 = arith.constant 1.280000e+02 : f32
    %167 = vector.broadcast %cst_66 : f32 to vector<16x1xf32>
    %168 = arith.divf %166, %167 : vector<16x1xf32>
    %169 = vector.broadcast %168 : vector<16x1xf32> to vector<16x128xf32>
    %170 = arith.subf %164, %169 : vector<16x128xf32>
    %171 = arith.mulf %170, %170 : vector<16x128xf32>
    %cst_67 = arith.constant dense<0.000000e+00> : vector<16xf32>
    %172 = vector.multi_reduction <add>, %171, %cst_67 [1] : vector<16x128xf32> to vector<16xf32>
    %173 = vector.shape_cast %172 : vector<16xf32> to vector<16x1xf32>
    %cst_68 = arith.constant 1.280000e+02 : f32
    %174 = vector.broadcast %cst_68 : f32 to vector<16x1xf32>
    %175 = arith.divf %173, %174 : vector<16x1xf32>
    %176 = vector.broadcast %168 : vector<16x1xf32> to vector<16x128xf32>
    %177 = arith.subf %164, %176 : vector<16x128xf32>
    %cst_69 = arith.constant 9.99999974E-6 : f32
    %178 = vector.broadcast %cst_69 : f32 to vector<16x1xf32>
    %179 = arith.addf %175, %178 : vector<16x1xf32>
    %180 = math.rsqrt %179 : vector<16x1xf32>
    %181 = vector.broadcast %180 : vector<16x1xf32> to vector<16x128xf32>
    %182 = arith.mulf %177, %181 : vector<16x128xf32>
    %c0_70 = arith.constant 0 : index
    %c0_71 = arith.constant 0 : index
    %c0_72 = arith.constant 0 : index
    %183 = vector.load %arg13[%c0_70, %c0_71, %c0_72] : memref<1x1x128xf32, #tpu.memory_space<vmem>>, vector<1x1x128xf32>
    %184 = vector.shape_cast %183 : vector<1x1x128xf32> to vector<1x128xf32>
    %185 = vector.broadcast %184 : vector<1x128xf32> to vector<16x128xf32>
    %186 = arith.mulf %182, %185 : vector<16x128xf32>
    %c0_73 = arith.constant 0 : index
    %c0_74 = arith.constant 0 : index
    %c0_75 = arith.constant 0 : index
    %187 = vector.load %arg14[%c0_73, %c0_74, %c0_75] : memref<1x1x128xf32, #tpu.memory_space<vmem>>, vector<1x1x128xf32>
    %188 = vector.shape_cast %187 : vector<1x1x128xf32> to vector<1x128xf32>
    %189 = vector.broadcast %188 : vector<1x128xf32> to vector<16x128xf32>
    %190 = arith.addf %186, %189 : vector<16x128xf32>
    %c0_76 = arith.constant 0 : index
    %c0_77 = arith.constant 0 : index
    %191 = vector.load %arg16[%c0_76, %c0_77] : memref<16x128xf32, #tpu.memory_space<vmem>>, vector<16x128xf32>
    tpu.vector_store %arg16[%c0_76, %c0_77], %190 {strides = array<i32>} : memref<16x128xf32, #tpu.memory_space<vmem>>, vector<16x128xf32>,
    %c5_i32 = arith.constant 5 : i32
    %192 = arith.cmpi eq, %arg1, %c5_i32 : i32
    %193 = arith.extui %192 : i1 to i32
    %c0_i32_78 = arith.constant 0 : i32
    %194 = arith.cmpi ne, %193, %c0_i32_78 : i32
    scf.if %194 {
      %c0_79 = arith.constant 0 : index
      %c0_80 = arith.constant 0 : index
      %c0_81 = arith.constant 0 : index
      %195 = vector.load %arg15[%c0_79, %c0_80, %c0_81] : memref<1x16x128xf32, #tpu.memory_space<vmem>>, vector<1x16x128xf32>
      %196 = vector.shape_cast %195 : vector<1x16x128xf32> to vector<16x128xf32>
      %197 = vector.shape_cast %190 : vector<16x128xf32> to vector<1x16x128xf32>
      tpu.vector_store %arg15[%c0_79, %c0_80, %c0_81], %197 {strides = array<i32>} : memref<1x16x128xf32, #tpu.memory_space<vmem>>, vector<1x16x128xf32>,
    } else {
    }
    return
  }
  func.func @transform_0(%arg0: i32, %arg1: i32) -> (i32, i32, i32) {
    %c0_i32 = arith.constant 0 : i32
    %c0_i32_0 = arith.constant 0 : i32
    %c0_i32_1 = arith.constant 0 : i32
    return %arg0, %c0_i32, %c0_i32_0 : i32, i32, i32
  }
  func.func @transform_1(%arg0: i32, %arg1: i32) -> (i32, i32, i32) {
    %c0_i32 = arith.constant 0 : i32
    %c0_i32_0 = arith.constant 0 : i32
    %c0_i32_1 = arith.constant 0 : i32
    return %arg1, %c0_i32, %c0_i32_0 : i32, i32, i32
  }
  func.func @transform_2(%arg0: i32, %arg1: i32) -> (i32, i32, i32) {
    %c0_i32 = arith.constant 0 : i32
    %c0_i32_0 = arith.constant 0 : i32
    %c0_i32_1 = arith.constant 0 : i32
    return %arg1, %c0_i32, %c0_i32_0 : i32, i32, i32
  }
  func.func @transform_3(%arg0: i32, %arg1: i32) -> (i32, i32, i32) {
    %c0_i32 = arith.constant 0 : i32
    %c0_i32_0 = arith.constant 0 : i32
    %c0_i32_1 = arith.constant 0 : i32
    return %arg1, %c0_i32, %c0_i32_0 : i32, i32, i32
  }
  func.func @transform_4(%arg0: i32, %arg1: i32) -> (i32, i32, i32) {
    %c0_i32 = arith.constant 0 : i32
    %c0_i32_0 = arith.constant 0 : i32
    %c0_i32_1 = arith.constant 0 : i32
    return %arg1, %c0_i32, %c0_i32_0 : i32, i32, i32
  }
  func.func @transform_5(%arg0: i32, %arg1: i32) -> (i32, i32, i32) {
    %c0_i32 = arith.constant 0 : i32
    %c0_i32_0 = arith.constant 0 : i32
    %c0_i32_1 = arith.constant 0 : i32
    return %arg1, %c0_i32, %c0_i32_0 : i32, i32, i32
  }
  func.func @transform_6(%arg0: i32, %arg1: i32) -> (i32, i32, i32) {
    %c0_i32 = arith.constant 0 : i32
    %c0_i32_0 = arith.constant 0 : i32
    %c0_i32_1 = arith.constant 0 : i32
    return %arg1, %c0_i32, %c0_i32_0 : i32, i32, i32
  }
  func.func @transform_7(%arg0: i32, %arg1: i32) -> (i32, i32, i32) {
    %c0_i32 = arith.constant 0 : i32
    %c0_i32_0 = arith.constant 0 : i32
    %c0_i32_1 = arith.constant 0 : i32
    return %arg1, %c0_i32, %c0_i32_0 : i32, i32, i32
  }
  func.func @transform_8(%arg0: i32, %arg1: i32) -> (i32, i32, i32) {
    %c0_i32 = arith.constant 0 : i32
    %c0_i32_0 = arith.constant 0 : i32
    %c0_i32_1 = arith.constant 0 : i32
    return %arg1, %c0_i32, %c0_i32_0 : i32, i32, i32
  }
  func.func @transform_9(%arg0: i32, %arg1: i32) -> (i32, i32, i32) {
    %c0_i32 = arith.constant 0 : i32
    %c0_i32_0 = arith.constant 0 : i32
    %c0_i32_1 = arith.constant 0 : i32
    return %arg1, %c0_i32, %c0_i32_0 : i32, i32, i32
  }
  func.func @transform_10(%arg0: i32, %arg1: i32) -> (i32, i32, i32) {
    %c0_i32 = arith.constant 0 : i32
    %c0_i32_0 = arith.constant 0 : i32
    %c0_i32_1 = arith.constant 0 : i32
    return %arg1, %c0_i32, %c0_i32_0 : i32, i32, i32
  }
  func.func @transform_11(%arg0: i32, %arg1: i32) -> (i32, i32, i32) {
    %c0_i32 = arith.constant 0 : i32
    %c0_i32_0 = arith.constant 0 : i32
    %c0_i32_1 = arith.constant 0 : i32
    return %arg1, %c0_i32, %c0_i32_0 : i32, i32, i32
  }
  func.func @transform_12(%arg0: i32, %arg1: i32) -> (i32, i32, i32) {
    %c0_i32 = arith.constant 0 : i32
    %c0_i32_0 = arith.constant 0 : i32
    %c0_i32_1 = arith.constant 0 : i32
    return %arg1, %c0_i32, %c0_i32_0 : i32, i32, i32
  }
  func.func @transform_13(%arg0: i32, %arg1: i32) -> (i32, i32, i32) {
    %c0_i32 = arith.constant 0 : i32
    %c0_i32_0 = arith.constant 0 : i32
    %c0_i32_1 = arith.constant 0 : i32
    return %arg0, %c0_i32, %c0_i32_0 : i32, i32, i32
  }
}

</mosaic_0001>

<llo_original>
// kernel: tpu_custom_call.1
$region0: #{tpu_custom_call.1}
  #allocation0 [shape = 'u32[]', space=smem, size = 0x4, offset = 0x4, fixed_abs, tag = 'smem constant byte address 0x4 - core index']
  #allocation1 [shape = 'u32[144,128]{1,0:T(1,128)}', space=vmem, size = 0x12000, scoped, tag = 'internal scratch']
  #allocation2 [shape = 'f32[16,128]{1,0:T(8,128)}', space=vmem, size = 0x2000, scoped, tag = 'scratch operand']
  %s0 = inlined_call_operand.hbm [shape: f32[2,16,128], index: 0, kind: input, shape index: {}]
  %s1 = inlined_call_operand.hbm [shape: bf16[6,128,384], index: 1, kind: input, shape index: {}]
  %s2 = inlined_call_operand.hbm [shape: f32[6,1,384], index: 2, kind: input, shape index: {}]
  %s3 = inlined_call_operand.hbm [shape: bf16[6,128,128], index: 3, kind: input, shape index: {}]
  %s4 = inlined_call_operand.vmem [shape: f32[6,1,128], index: 4, kind: input, shape index: {}]
  %s5 = inlined_call_operand.hbm [shape: f32[6,1,128], index: 5, kind: input, shape index: {}]
  %s6 = inlined_call_operand.hbm [shape: f32[6,1,128], index: 6, kind: input, shape index: {}]
  %s7 = inlined_call_operand.hbm [shape: bf16[6,128,512], index: 7, kind: input, shape index: {}]
  %s8 = inlined_call_operand.hbm [shape: f32[6,1,512], index: 8, kind: input, shape index: {}]
  %s9 = inlined_call_operand.hbm [shape: bf16[6,512,128], index: 9, kind: input, shape index: {}]
  %s10 = inlined_call_operand.vmem [shape: f32[6,1,128], index: 10, kind: input, shape index: {}]
  %s11 = inlined_call_operand.vmem [shape: f32[6,1,128], index: 11, kind: input, shape index: {}]
  %s12 = inlined_call_operand.hbm [shape: f32[6,1,128], index: 12, kind: input, shape index: {}]
  %s13 = inlined_call_operand.hbm [shape: f32[2,16,128], index: 13, kind: output, shape index: {}]
  %s14 = sld [smem:[#allocation0]]
  $region133: #{tpu_custom_call.1} parent=0
    _
  %s16 = ssub.s32 1, %s14
  %s17 = scalar_select 0, %s16, %s14
  $region1: #{tpu_custom_call.1} parent=0
    #allocation3 [shape = 'u8[16384]{0}', space=vmem, size = 0x4000, scoped, tag = 'input window, operand 0']
    #allocation4 [shape = 's32[2]{0}', space=sflag, size = 0x8, scoped, tag = 'scoped memory for tpu_custom_call.1']
    #allocation5 [shape = 's32[2]{0}', space=sflag, size = 0x8, scoped, tag = 'scoped memory for tpu_custom_call.1']
    #allocation6 [shape = 'u8[196608]{0}', space=vmem, size = 0x30000, scoped, tag = 'input window, operand 1']
    #allocation7 [shape = 's32[2]{0}', space=sflag, size = 0x8, scoped, tag = 'scoped memory for tpu_custom_call.1']
    #allocation8 [shape = 'u8[3072]{0}', space=vmem, size = 0xc00, scoped, tag = 'input window, operand 2']
    #allocation9 [shape = 'u8[65536]{0}', space=vmem, size = 0x10000, scoped, tag = 'input window, operand 3']
    #allocation10 [shape = 's32[2]{0}', space=sflag, size = 0x8, scoped, tag = 'scoped memory for tpu_custom_call.1']
    #allocation11 [shape = 'u8[1024]{0}', space=vmem, size = 0x400, scoped, tag = 'input window, operand 5']
    #allocation12 [shape = 'u8[1024]{0}', space=vmem, size = 0x400, scoped, tag = 'input window, operand 6']
    #allocation13 [shape = 's32[2]{0}', space=sflag, size = 0x8, scoped, tag = 'scoped memory for tpu_custom_call.1']
    #allocation14 [shape = 'u8[262144]{0}', space=vmem, size = 0x40000, scoped, tag = 'input window, operand 7']
    #allocation15 [shape = 'u8[4096]{0}', space=vmem, size = 0x1000, scoped, tag = 'input window, operand 8']
    #allocation16 [shape = 's32[2]{0}', space=sflag, size = 0x8, scoped, tag = 'scoped memory for tpu_custom_call.1']
    #allocation17 [shape = 'u8[262144]{0}', space=vmem, size = 0x40000, scoped, tag = 'input window, operand 9']
    #allocation18 [shape = 'u8[1024]{0}', space=vmem, size = 0x400, scoped, tag = 'input window, operand 12']
    #allocation19 [shape = 's32[2]{0}', space=sflag, size = 0x8, scoped, tag = 'scoped memory for tpu_custom_call.1']
    #allocation20 [shape = 'u8[16384]{0}', space=vmem, size = 0x4000, scoped, tag = 'output window, operand 0']
    %18 = vsyncpa [#allocation4], 0
    %s19 = scalar_lea.sflag [#allocation4], 1
    %20 = vsyncpa %s19, 0
    %21 = vsyncpa [#allocation7], 0
    %s22 = scalar_lea.sflag [#allocation7], 1
    %23 = vsyncpa %s22, 0
    %24 = vsyncpa [#allocation10], 0
    %s25 = scalar_lea.sflag [#allocation10], 1
    %26 = vsyncpa %s25, 0
    %27 = vsyncpa [#allocation13], 0
    %s28 = scalar_lea.sflag [#allocation13], 1
    %29 = vsyncpa %s28, 0
    %30 = vsyncpa [#allocation16], 0
    %s31 = scalar_lea.sflag [#allocation16], 1
    %32 = vsyncpa %s31, 0
    %33 = vsyncpa [#allocation19], 0
    %s34 = scalar_lea.sflag [#allocation19], 1
    %35 = vsyncpa %s34, 0
    %36 = vsyncpa [#allocation5], 0
    %s37 = scalar_lea.sflag [#allocation5], 1
    %38 = vsyncpa %s37, 0
    loop: start=0, step=1, limit=14
    $region2: #{tpu_custom_call.1} parent=1 // loop_pre_header
      _
    $region3: #{tpu_custom_call.1} parent=1 // loop_header
      %s40 = sphi 0, %s44
      %p41 = scmp.ge.s32.totalorder %s40, 14
      %s47 = sphi 0, %s59
      %s48 = sphi 0, %s55
      %s49 = sphi 0, %s47
      %s50 = sphi 0, %s48
      %s51 = sphi 0, %s49
      %s52 = sphi 0, %s50
      %s62 = sphi 0, %s64
      %s65 = sphi 0, %s62
      %s66 = sphi 0, %s65
      %s82 = sphi 0, %s66
      %s88 = sphi 0, %s90
      %s91 = sphi 0, %s88
      %s92 = sphi 0, %s91
      %s108 = sphi 0, %s92
      %s114 = sphi 0, %s116
      %s117 = sphi 0, %s114
      %s118 = sphi 0, %s117
      %s134 = sphi 0, %s118
      %s140 = sphi 0, %s142
      %s143 = sphi 0, %s140
      %s144 = sphi 0, %s143
      %s160 = sphi 0, %s144
      %s166 = sphi 0, %s168
      %s169 = sphi 0, %s166
      %s170 = sphi 0, %s169
      %s186 = sphi 0, %s170
      %s192 = sphi 0, %s194
      %s195 = sphi 0, %s192
      %s196 = sphi 0, %s195
      %s212 = sphi 0, %s196
      %s218 = sphi 0, %s220
      %s221 = sphi 0, %s218
      %s222 = sphi 0, %s221
      %s238 = sphi 0, %s222
      %s244 = sphi 0, %s246
      %s247 = sphi 0, %s244
      %s248 = sphi 0, %s247
      %s264 = sphi 0, %s248
      %s270 = sphi 0, %s272
      %s273 = sphi 0, %s270
      %s274 = sphi 0, %s273
      %s290 = sphi 0, %s274
      %s296 = sphi 0, %s298
      %s299 = sphi 0, %s296
      %s300 = sphi 0, %s299
      %s316 = sphi 0, %s300
      %s322 = sphi 0, %s324
      %s325 = sphi 0, %s322
      %s326 = sphi 0, %s325
      %s342 = sphi 0, %s326
      %s348 = sphi 0, %s350
      %s351 = sphi 0, %s348
      %s352 = sphi 0, %s351
      %s368 = sphi 0, %s352
      %s374 = sphi 0, %s376
      %s377 = sphi 0, %s374
      %s378 = sphi 0, %s377
      %s394 = sphi 0, %s378
      %s400 = sphi 0, %s402
      %s403 = sphi 0, %s400
      %s404 = sphi 0, %s403
      %s420 = sphi 0, %s404
    $region4: #{tpu_custom_call.1} parent=1 // loop_header_branch
      %43 = sbr.rel (%p41) target = $region8
    $region5: #{tpu_custom_call.1} parent=1 // loop_body
      %s45 = ssub.s32 %s40, 1
      %s46 = ssub.s32 %s40, 2
      %s53 = sadd.s32 1, %s48
      %p54 = scmp.ge.s32.totalorder %s53, 6
      %s55 = scalar_select %p54, 0, %s53
      %s56 = sadd.s32 1, %s47
      %s57 = scalar_select %p54, %s56, %s47
      %p58 = scmp.ge.s32.totalorder %s57, 2
      %s59 = scalar_select %p58, 0, %s57
      %s60 = ssub.s32 %s47, %s59
      %p61 = scmp.eq.s32.totalorder %s60, 0
      %s63 = sadd.s32 %s62, 1
      %s64 = scalar_select %p61, %s62, %s63
      %p67 = pneg %p61
      %p68 = scmp.eq.s32.totalorder %s40, 11
      %p69 = por %p67, %p68
      %p70 = scmp.ne.s32.totalorder %s62, %s65
      %p71 = scmp.eq.s32.totalorder %s40, 0
      %p72 = por %p70, %p71
      %p73 = scmp.ne.s32.totalorder %s62, %s65
      %p74 = scmp.eq.s32.totalorder %s45, 11
      %p75 = por %p73, %p74
      %p76 = scmp.ne.s32.totalorder %s65, %s66
      %p77 = scmp.eq.s32.totalorder %s45, 0
      %p78 = por %p76, %p77
      %p79 = scmp.ne.s32.totalorder %s65, %s66
      %p80 = scmp.eq.s32.totalorder %s46, 11
      %p81 = por %p79, %p80
      %p83 = scmp.ne.s32.totalorder %s66, %s82
      %p84 = scmp.eq.s32.totalorder %s46, 0
      %p85 = por %p83, %p84
      %s86 = ssub.s32 %s48, %s55
      %p87 = scmp.eq.s32.totalorder %s86, 0
      %s89 = sadd.s32 %s88, 1
      %s90 = scalar_select %p87, %s88, %s89
      %p93 = pneg %p87
      %p94 = scmp.eq.s32.totalorder %s40, 11
      %p95 = por %p93, %p94
      %p96 = scmp.ne.s32.totalorder %s88, %s91
      %p97 = scmp.eq.s32.totalorder %s40, 0
      %p98 = por %p96, %p97
      %p99 = scmp.ne.s32.totalorder %s88, %s91
      %p100 = scmp.eq.s32.totalorder %s45, 11
      %p101 = por %p99, %p100
      %p102 = scmp.ne.s32.totalorder %s91, %s92
      %p103 = scmp.eq.s32.totalorder %s45, 0
      %p104 = por %p102, %p103
      %p105 = scmp.ne.s32.totalorder %s91, %s92
      %p106 = scmp.eq.s32.totalorder %s46, 11
      %p107 = por %p105, %p106
      %p109 = scmp.ne.s32.totalorder %s92, %s108
      %p110 = scmp.eq.s32.totalorder %s46, 0
      %p111 = por %p109, %p110
      %s112 = ssub.s32 %s48, %s55
      %p113 = scmp.eq.s32.totalorder %s112, 0
      %s115 = sadd.s32 %s114, 1
      %s116 = scalar_select %p113, %s114, %s115
      %p119 = pneg %p113
      %p120 = scmp.eq.s32.totalorder %s40, 11
      %p121 = por %p119, %p120
      %p122 = scmp.ne.s32.totalorder %s114, %s117
      %p123 = scmp.eq.s32.totalorder %s40, 0
      %p124 = por %p122, %p123
      %p125 = scmp.ne.s32.totalorder %s114, %s117
      %p126 = scmp.eq.s32.totalorder %s45, 11
      %p127 = por %p125, %p126
      %p128 = scmp.ne.s32.totalorder %s117, %s118
      %p129 = scmp.eq.s32.totalorder %s45, 0
      %p130 = por %p128, %p129
      %p131 = scmp.ne.s32.totalorder %s117, %s118
      %p132 = scmp.eq.s32.totalorder %s46, 11
      %p133 = por %p131, %p132
      %p135 = scmp.ne.s32.totalorder %s118, %s134
      %p136 = scmp.eq.s32.totalorder %s46, 0
      %p137 = por %p135, %p136
      %s138 = ssub.s32 %s48, %s55
      %p139 = scmp.eq.s32.totalorder %s138, 0
      %s141 = sadd.s32 %s140, 1
      %s142 = scalar_select %p139, %s140, %s141
      %p145 = pneg %p139
      %p146 = scmp.eq.s32.totalorder %s40, 11
      %p147 = por %p145, %p146
      %p148 = scmp.ne.s32.totalorder %s140, %s143
      %p149 = scmp.eq.s32.totalorder %s40, 0
      %p150 = por %p148, %p149
      %p151 = scmp.ne.s32.totalorder %s140, %s143
      %p152 = scmp.eq.s32.totalorder %s45, 11
      %p153 = por %p151, %p152
      %p154 = scmp.ne.s32.totalorder %s143, %s144
      %p155 = scmp.eq.s32.totalorder %s45, 0
      %p156 = por %p154, %p155
      %p157 = scmp.ne.s32.totalorder %s143, %s144
      %p158 = scmp.eq.s32.totalorder %s46, 11
      %p159 = por %p157, %p158
      %p161 = scmp.ne.s32.totalorder %s144, %s160
      %p162 = scmp.eq.s32.totalorder %s46, 0
      %p163 = por %p161, %p162
      %s164 = ssub.s32 %s48, %s55
      %p165 = scmp.eq.s32.totalorder %s164, 0
      %s167 = sadd.s32 %s166, 1
      %s168 = scalar_select %p165, %s166, %s167
      %p171 = pneg %p165
      %p172 = scmp.eq.s32.totalorder %s40, 11
      %p173 = por %p171, %p172
      %p174 = scmp.ne.s32.totalorder %s166, %s169
      %p175 = scmp.eq.s32.totalorder %s40, 0
      %p176 = por %p174, %p175
      %p177 = scmp.ne.s32.totalorder %s166, %s169
      %p178 = scmp.eq.s32.totalorder %s45, 11
      %p179 = por %p177, %p178
      %p180 = scmp.ne.s32.totalorder %s169, %s170
      %p181 = scmp.eq.s32.totalorder %s45, 0
      %p182 = por %p180, %p181
      %p183 = scmp.ne.s32.totalorder %s169, %s170
      %p184 = scmp.eq.s32.totalorder %s46, 11
      %p185 = por %p183, %p184
      %p187 = scmp.ne.s32.totalorder %s170, %s186
      %p188 = scmp.eq.s32.totalorder %s46, 0
      %p189 = por %p187, %p188
      %s190 = ssub.s32 %s48, %s55
      %p191 = scmp.eq.s32.totalorder %s190, 0
      %s193 = sadd.s32 %s192, 1
      %s194 = scalar_select %p191, %s192, %s193
      %p197 = pneg %p191
      %p198 = scmp.eq.s32.totalorder %s40, 11
      %p199 = por %p197, %p198
      %p200 = scmp.ne.s32.totalorder %s192, %s195
      %p201 = scmp.eq.s32.totalorder %s40, 0
      %p202 = por %p200, %p201
      %p203 = scmp.ne.s32.totalorder %s192, %s195
      %p204 = scmp.eq.s32.totalorder %s45, 11
      %p205 = por %p203, %p204
      %p206 = scmp.ne.s32.totalorder %s195, %s196
      %p207 = scmp.eq.s32.totalorder %s45, 0
      %p208 = por %p206, %p207
      %p209 = scmp.ne.s32.totalorder %s195, %s196
      %p210 = scmp.eq.s32.totalorder %s46, 11
      %p211 = por %p209, %p210
      %p213 = scmp.ne.s32.totalorder %s196, %s212
      %p214 = scmp.eq.s32.totalorder %s46, 0
      %p215 = por %p213, %p214
      %s216 = ssub.s32 %s48, %s55
      %p217 = scmp.eq.s32.totalorder %s216, 0
      %s219 = sadd.s32 %s218, 1
      %s220 = scalar_select %p217, %s218, %s219
      %p223 = pneg %p217
      %p224 = scmp.eq.s32.totalorder %s40, 11
      %p225 = por %p223, %p224
      %p226 = scmp.ne.s32.totalorder %s218, %s221
      %p227 = scmp.eq.s32.totalorder %s40, 0
      %p228 = por %p226, %p227
      %p229 = scmp.ne.s32.totalorder %s218, %s221
      %p230 = scmp.eq.s32.totalorder %s45, 11
      %p231 = por %p229, %p230
      %p232 = scmp.ne.s32.totalorder %s221, %s222
      %p233 = scmp.eq.s32.totalorder %s45, 0
      %p234 = por %p232, %p233
      %p235 = scmp.ne.s32.totalorder %s221, %s222
      %p236 = scmp.eq.s32.totalorder %s46, 11
      %p237 = por %p235, %p236
      %p239 = scmp.ne.s32.totalorder %s222, %s238
      %p240 = scmp.eq.s32.totalorder %s46, 0
      %p241 = por %p239, %p240
      %s242 = ssub.s32 %s48, %s55
      %p243 = scmp.eq.s32.totalorder %s242, 0
      %s245 = sadd.s32 %s244, 1
      %s246 = scalar_select %p243, %s244, %s245
      %p249 = pneg %p243
      %p250 = scmp.eq.s32.totalorder %s40, 11
      %p251 = por %p249, %p250
      %p252 = scmp.ne.s32.totalorder %s244, %s247
      %p253 = scmp.eq.s32.totalorder %s40, 0
      %p254 = por %p252, %p253
      %p255 = scmp.ne.s32.totalorder %s244, %s247
      %p256 = scmp.eq.s32.totalorder %s45, 11
      %p257 = por %p255, %p256
      %p258 = scmp.ne.s32.totalorder %s247, %s248
      %p259 = scmp.eq.s32.totalorder %s45, 0
      %p260 = por %p258, %p259
      %p261 = scmp.ne.s32.totalorder %s247, %s248
      %p262 = scmp.eq.s32.totalorder %s46, 11
      %p263 = por %p261, %p262
      %p265 = scmp.ne.s32.totalorder %s248, %s264
      %p266 = scmp.eq.s32.totalorder %s46, 0
      %p267 = por %p265, %p266
      %s268 = ssub.s32 %s48, %s55
      %p269 = scmp.eq.s32.totalorder %s268, 0
      %s271 = sadd.s32 %s270, 1
      %s272 = scalar_select %p269, %s270, %s271
      %p275 = pneg %p269
      %p276 = scmp.eq.s32.totalorder %s40, 11
      %p277 = por %p275, %p276
      %p278 = scmp.ne.s32.totalorder %s270, %s273
      %p279 = scmp.eq.s32.totalorder %s40, 0
      %p280 = por %p278, %p279
      %p281 = scmp.ne.s32.totalorder %s270, %s273
      %p282 = scmp.eq.s32.totalorder %s45, 11
      %p283 = por %p281, %p282
      %p284 = scmp.ne.s32.totalorder %s273, %s274
      %p285 = scmp.eq.s32.totalorder %s45, 0
      %p286 = por %p284, %p285
      %p287 = scmp.ne.s32.totalorder %s273, %s274
      %p288 = scmp.eq.s32.totalorder %s46, 11
      %p289 = por %p287, %p288
      %p291 = scmp.ne.s32.totalorder %s274, %s290
      %p292 = scmp.eq.s32.totalorder %s46, 0
      %p293 = por %p291, %p292
      %s294 = ssub.s32 %s48, %s55
      %p295 = scmp.eq.s32.totalorder %s294, 0
      %s297 = sadd.s32 %s296, 1
      %s298 = scalar_select %p295, %s296, %s297
      %p301 = pneg %p295
      %p302 = scmp.eq.s32.totalorder %s40, 11
      %p303 = por %p301, %p302
      %p304 = scmp.ne.s32.totalorder %s296, %s299
      %p305 = scmp.eq.s32.totalorder %s40, 0
      %p306 = por %p304, %p305
      %p307 = scmp.ne.s32.totalorder %s296, %s299
      %p308 = scmp.eq.s32.totalorder %s45, 11
      %p309 = por %p307, %p308
      %p310 = scmp.ne.s32.totalorder %s299, %s300
      %p311 = scmp.eq.s32.totalorder %s45, 0
      %p312 = por %p310, %p311
      %p313 = scmp.ne.s32.totalorder %s299, %s300
      %p314 = scmp.eq.s32.totalorder %s46, 11
      %p315 = por %p313, %p314
      %p317 = scmp.ne.s32.totalorder %s300, %s316
      %p318 = scmp.eq.s32.totalorder %s46, 0
      %p319 = por %p317, %p318
      %s320 = ssub.s32 %s48, %s55
      %p321 = scmp.eq.s32.totalorder %s320, 0
      %s323 = sadd.s32 %s322, 1
      %s324 = scalar_select %p321, %s322, %s323
      %p327 = pneg %p321
      %p328 = scmp.eq.s32.totalorder %s40, 11
      %p329 = por %p327, %p328
      %p330 = scmp.ne.s32.totalorder %s322, %s325
      %p331 = scmp.eq.s32.totalorder %s40, 0
      %p332 = por %p330, %p331
      %p333 = scmp.ne.s32.totalorder %s322, %s325
      %p334 = scmp.eq.s32.totalorder %s45, 11
      %p335 = por %p333, %p334
      %p336 = scmp.ne.s32.totalorder %s325, %s326
      %p337 = scmp.eq.s32.totalorder %s45, 0
      %p338 = por %p336, %p337
      %p339 = scmp.ne.s32.totalorder %s325, %s326
      %p340 = scmp.eq.s32.totalorder %s46, 11
      %p341 = por %p339, %p340
      %p343 = scmp.ne.s32.totalorder %s326, %s342
      %p344 = scmp.eq.s32.totalorder %s46, 0
      %p345 = por %p343, %p344
      %s346 = ssub.s32 %s48, %s55
      %p347 = scmp.eq.s32.totalorder %s346, 0
      %s349 = sadd.s32 %s348, 1
      %s350 = scalar_select %p347, %s348, %s349
      %p353 = pneg %p347
      %p354 = scmp.eq.s32.totalorder %s40, 11
      %p355 = por %p353, %p354
      %p356 = scmp.ne.s32.totalorder %s348, %s351
      %p357 = scmp.eq.s32.totalorder %s40, 0
      %p358 = por %p356, %p357
      %p359 = scmp.ne.s32.totalorder %s348, %s351
      %p360 = scmp.eq.s32.totalorder %s45, 11
      %p361 = por %p359, %p360
      %p362 = scmp.ne.s32.totalorder %s351, %s352
      %p363 = scmp.eq.s32.totalorder %s45, 0
      %p364 = por %p362, %p363
      %p365 = scmp.ne.s32.totalorder %s351, %s352
      %p366 = scmp.eq.s32.totalorder %s46, 11
      %p367 = por %p365, %p366
      %p369 = scmp.ne.s32.totalorder %s352, %s368
      %p370 = scmp.eq.s32.totalorder %s46, 0
      %p371 = por %p369, %p370
      %s372 = ssub.s32 %s48, %s55
      %p373 = scmp.eq.s32.totalorder %s372, 0
      %s375 = sadd.s32 %s374, 1
      %s376 = scalar_select %p373, %s374, %s375
      %p379 = pneg %p373
      %p380 = scmp.eq.s32.totalorder %s40, 11
      %p381 = por %p379, %p380
      %p382 = scmp.ne.s32.totalorder %s374, %s377
      %p383 = scmp.eq.s32.totalorder %s40, 0
      %p384 = por %p382, %p383
      %p385 = scmp.ne.s32.totalorder %s374, %s377
      %p386 = scmp.eq.s32.totalorder %s45, 11
      %p387 = por %p385, %p386
      %p388 = scmp.ne.s32.totalorder %s377, %s378
      %p389 = scmp.eq.s32.totalorder %s45, 0
      %p390 = por %p388, %p389
      %p391 = scmp.ne.s32.totalorder %s377, %s378
      %p392 = scmp.eq.s32.totalorder %s46, 11
      %p393 = por %p391, %p392
      %p395 = scmp.ne.s32.totalorder %s378, %s394
      %p396 = scmp.eq.s32.totalorder %s46, 0
      %p397 = por %p395, %p396
      %s398 = ssub.s32 %s47, %s59
      %p399 = scmp.eq.s32.totalorder %s398, 0
      %s401 = sadd.s32 %s400, 1
      %s402 = scalar_select %p399, %s400, %s401
      %p405 = pneg %p399
      %p406 = scmp.eq.s32.totalorder %s40, 11
      %p407 = por %p405, %p406
      %p408 = scmp.ne.s32.totalorder %s400, %s403
      %p409 = scmp.eq.s32.totalorder %s40, 0
      %p410 = por %p408, %p409
      %p411 = scmp.ne.s32.totalorder %s400, %s403
      %p412 = scmp.eq.s32.totalorder %s45, 11
      %p413 = por %p411, %p412
      %p414 = scmp.ne.s32.totalorder %s403, %s404
      %p415 = scmp.eq.s32.totalorder %s45, 0
      %p416 = por %p414, %p415
      %p417 = scmp.ne.s32.totalorder %s403, %s404
      %p418 = scmp.eq.s32.totalorder %s46, 11
      %p419 = por %p417, %p418
      %p421 = scmp.ne.s32.totalorder %s404, %s420
      %p422 = scmp.eq.s32.totalorder %s46, 0
      %p423 = por %p421, %p422
      %p424 = scmp.le.s32.totalorder 1, %s40
      %p425 = scmp.lt.s32.totalorder %s40, 13
      %p426 = pnand %p424, %p425
      %p427 = pneg %p426
      // Predicated region
      $region9: #{tpu_custom_call.1} parent=5 // pred_check
        _
      $region10: #{tpu_custom_call.1} parent=5 // pred_check_branch
        %429 = sbr.rel (%p426) target = $region12
      $region11: #{tpu_custom_call.1} parent=5 // pred_region
        %s430 = ssub.s32 %s40, 1
      $region12: #{tpu_custom_call.1} parent=5 // pred_fallthru
        _
      %p431 = scmp.lt.s32.totalorder %s40, 12
      // Predicated region
      $region13: #{tpu_custom_call.1} parent=5 // pred_check
        %p432 = pneg %p431
      $region14: #{tpu_custom_call.1} parent=5 // pred_check_branch
        %434 = sbr.rel (%p432) target = $region16
      $region15: #{tpu_custom_call.1} parent=5 // pred_region
        // Predicated region
        $region17: #{tpu_custom_call.1} parent=15 // pred_check
          %p435 = pneg %p72
        $region18: #{tpu_custom_call.1} parent=15 // pred_check_branch
          %437 = sbr.rel (%p435) target = $region20
        $region19: #{tpu_custom_call.1} parent=15 // pred_region
          %s438 = sand.u32 %s62, 1
          %s439 = scalar_lea.sflag [#allocation4], %s438
          %s440 = sand.u32 %s62, 1
          %s441 = smul.addr %s440, 16
          %s442 = scalar_lea.vmem [#allocation3], %s441
          %s444 = ssub.s32 256, 256
          %445 = vsyncadd %s439, %s444
          %s446 = smul.addr %s47, 2
          %s447 = smul.addr %s446, 128
          %s448 = scalar_lea.hbm %s0, %s447
          %s449 = sshll.u32 %s442, 4
          %s450 = int_to_ptr.vmem [resolvable:$true] %s449
          %455 = dma.hbm_to_vmem [thread:$0]  %s448, 256, %s450, %s439, 128, 128, 8
        $region20: #{tpu_custom_call.1} parent=15 // pred_fallthru
          _
        // Predicated region
        $region21: #{tpu_custom_call.1} parent=15 // pred_check
          %p456 = pneg %p98
        $region22: #{tpu_custom_call.1} parent=15 // pred_check_branch
          %458 = sbr.rel (%p456) target = $region24
        $region23: #{tpu_custom_call.1} parent=15 // pred_region
          %s459 = sand.u32 %s40, 1
          %s460 = scalar_lea.sflag [#allocation7], %s459
          %s461 = sand.u32 %s88, 1
          %s462 = smul.addr %s461, 192
          %s463 = scalar_lea.vmem [#allocation6], %s462
          %s465 = ssub.s32 3072, 3072
          %466 = vsyncadd %s460, %s465
          %s467 = smul.addr %s48, 48
          %s468 = smul.addr %s467, 64
          %s469 = scalar_lea.hbm %s1, %s468
          %s470 = sshll.u32 %s463, 4
          %s471 = int_to_ptr.vmem [resolvable:$true] %s470
          %476 = dma.hbm_to_vmem [thread:$0]  %s469, 3072, %s471, %s460, 192, 192, 12
        $region24: #{tpu_custom_call.1} parent=15 // pred_fallthru
          _
        // Predicated region
        $region25: #{tpu_custom_call.1} parent=15 // pred_check
          %p477 = pneg %p124
        $region26: #{tpu_custom_call.1} parent=15 // pred_check_branch
          %479 = sbr.rel (%p477) target = $region28
        $region27: #{tpu_custom_call.1} parent=15 // pred_region
          %s480 = sand.u32 %s40, 1
          %s481 = scalar_lea.sflag [#allocation7], %s480
          %s482 = sand.u32 %s114, 1
          %s483 = smul.addr %s482, 3
          %s484 = scalar_lea.vmem [#allocation8], %s483
          %s486 = ssub.s32 48, 48
          %487 = vsyncadd %s481, %s486
          %s488 = smul.addr %s48, 3
          %s489 = smul.addr %s488, 16
          %s490 = scalar_lea.hbm %s2, %s489
          %s492 = sshll.u32 %s484, 4
          %s493 = int_to_ptr.vmem [resolvable:$true] %s492
          %495 = dma.hbm_to_vmem [thread:$0]  %s490, 48, %s493, %s481
        $region28: #{tpu_custom_call.1} parent=15 // pred_fallthru
          _
        // Predicated region
        $region29: #{tpu_custom_call.1} parent=15 // pred_check
          %p496 = pneg %p150
        $region30: #{tpu_custom_call.1} parent=15 // pred_check_branch
          %498 = sbr.rel (%p496) target = $region32
        $region31: #{tpu_custom_call.1} parent=15 // pred_region
          %s499 = sand.u32 %s40, 1
          %s500 = scalar_lea.sflag [#allocation10], %s499
          %s501 = sand.u32 %s140, 1
          %s502 = smul.addr %s501, 64
          %s503 = scalar_lea.vmem [#allocation9], %s502
          %s505 = ssub.s32 1024, 1024
          %506 = vsyncadd %s500, %s505
          %s507 = smul.addr %s48, 16
          %s508 = smul.addr %s507, 64
          %s509 = scalar_lea.hbm %s3, %s508
          %s510 = sshll.u32 %s503, 4
          %s511 = int_to_ptr.vmem [resolvable:$true] %s510
          %516 = dma.hbm_to_vmem [thread:$0]  %s509, 1024, %s511, %s500, 64, 64, 4
        $region32: #{tpu_custom_call.1} parent=15 // pred_fallthru
          _
        // Predicated region
        $region33: #{tpu_custom_call.1} parent=15 // pred_check
          %p517 = pneg %p176
        $region34: #{tpu_custom_call.1} parent=15 // pred_check_branch
          %519 = sbr.rel (%p517) target = $region36
        $region35: #{tpu_custom_call.1} parent=15 // pred_region
          %p520 = scmp.lt.s32.totalorder %s48, 5
          %s521 = scalar_select %p520, %s48, 5
          %s522 = scalar_lea.vmem %s4, %s521
        $region36: #{tpu_custom_call.1} parent=15 // pred_fallthru
          _
        // Predicated region
        $region37: #{tpu_custom_call.1} parent=15 // pred_check
          %p523 = pneg %p202
        $region38: #{tpu_custom_call.1} parent=15 // pred_check_branch
          %525 = sbr.rel (%p523) target = $region40
        $region39: #{tpu_custom_call.1} parent=15 // pred_region
          %s526 = sand.u32 %s40, 1
          %s527 = scalar_lea.sflag [#allocation10], %s526
          %s528 = sand.u32 %s192, 1
          %s529 = scalar_lea.vmem [#allocation11], %s528
          %s531 = ssub.s32 16, 16
          %532 = vsyncadd %s527, %s531
          %s533 = smul.addr %s48, 16
          %s534 = scalar_lea.hbm %s5, %s533
          %s536 = sshll.u32 %s529, 4
          %s537 = int_to_ptr.vmem [resolvable:$true] %s536
          %539 = dma.hbm_to_vmem [thread:$0]  %s534, 16, %s537, %s527
        $region40: #{tpu_custom_call.1} parent=15 // pred_fallthru
          _
        // Predicated region
        $region41: #{tpu_custom_call.1} parent=15 // pred_check
          %p540 = pneg %p228
        $region42: #{tpu_custom_call.1} parent=15 // pred_check_branch
          %542 = sbr.rel (%p540) target = $region44
        $region43: #{tpu_custom_call.1} parent=15 // pred_region
          %s543 = sand.u32 %s40, 1
          %s544 = scalar_lea.sflag [#allocation13], %s543
          %s545 = sand.u32 %s218, 1
          %s546 = scalar_lea.vmem [#allocation12], %s545
          %s548 = ssub.s32 16, 16
          %549 = vsyncadd %s544, %s548
          %s550 = smul.addr %s48, 16
          %s551 = scalar_lea.hbm %s6, %s550
          %s553 = sshll.u32 %s546, 4
          %s554 = int_to_ptr.vmem [resolvable:$true] %s553
          %556 = dma.hbm_to_vmem [thread:$0]  %s551, 16, %s554, %s544
        $region44: #{tpu_custom_call.1} parent=15 // pred_fallthru
          _
        // Predicated region
        $region45: #{tpu_custom_call.1} parent=15 // pred_check
          %p557 = pneg %p254
        $region46: #{tpu_custom_call.1} parent=15 // pred_check_branch
          %559 = sbr.rel (%p557) target = $region48
        $region47: #{tpu_custom_call.1} parent=15 // pred_region
          %s560 = sand.u32 %s40, 1
          %s561 = scalar_lea.sflag [#allocation13], %s560
          %s562 = sand.u32 %s244, 1
          %s563 = smul.addr %s562, 256
          %s564 = scalar_lea.vmem [#allocation14], %s563
          %s566 = ssub.s32 4096, 4096
          %567 = vsyncadd %s561, %s566
          %s568 = smul.addr %s48, 64
          %s569 = smul.addr %s568, 64
          %s570 = scalar_lea.hbm %s7, %s569
          %s571 = sshll.u32 %s564, 4
          %s572 = int_to_ptr.vmem [resolvable:$true] %s571
          %577 = dma.hbm_to_vmem [thread:$0]  %s570, 4096, %s572, %s561, 256, 256, 16
        $region48: #{tpu_custom_call.1} parent=15 // pred_fallthru
          _
        // Predicated region
        $region49: #{tpu_custom_call.1} parent=15 // pred_check
          %p578 = pneg %p280
        $region50: #{tpu_custom_call.1} parent=15 // pred_check_branch
          %580 = sbr.rel (%p578) target = $region52
        $region51: #{tpu_custom_call.1} parent=15 // pred_region
          %s581 = sand.u32 %s40, 1
          %s582 = scalar_lea.sflag [#allocation16], %s581
          %s583 = sand.u32 %s270, 1
          %s584 = smul.addr %s583, 4
          %s585 = scalar_lea.vmem [#allocation15], %s584
          %s587 = ssub.s32 64, 64
          %588 = vsyncadd %s582, %s587
          %s589 = smul.addr %s48, 4
          %s590 = smul.addr %s589, 16
          %s591 = scalar_lea.hbm %s8, %s590
          %s593 = sshll.u32 %s585, 4
          %s594 = int_to_ptr.vmem [resolvable:$true] %s593
          %596 = dma.hbm_to_vmem [thread:$0]  %s591, 64, %s594, %s582
        $region52: #{tpu_custom_call.1} parent=15 // pred_fallthru
          _
        // Predicated region
        $region53: #{tpu_custom_call.1} parent=15 // pred_check
          %p597 = pneg %p306
        $region54: #{tpu_custom_call.1} parent=15 // pred_check_branch
          %599 = sbr.rel (%p597) target = $region56
        $region55: #{tpu_custom_call.1} parent=15 // pred_region
          %s600 = sand.u32 %s40, 1
          %s601 = scalar_lea.sflag [#allocation16], %s600
          %s602 = sand.u32 %s296, 1
          %s603 = smul.addr %s602, 256
          %s604 = scalar_lea.vmem [#allocation17], %s603
          %s606 = ssub.s32 4096, 4096
          %607 = vsyncadd %s601, %s606
          %s608 = smul.addr %s48, 64
          %s609 = smul.addr %s608, 64
          %s610 = scalar_lea.hbm %s9, %s609
          %s611 = sshll.u32 %s604, 4
          %s612 = int_to_ptr.vmem [resolvable:$true] %s611
          %617 = dma.hbm_to_vmem [thread:$0]  %s610, 4096, %s612, %s601, 64, 64, 4
        $region56: #{tpu_custom_call.1} parent=15 // pred_fallthru
          _
        // Predicated region
        $region57: #{tpu_custom_call.1} parent=15 // pred_check
          %p618 = pneg %p332
        $region58: #{tpu_custom_call.1} parent=15 // pred_check_branch
          %620 = sbr.rel (%p618) target = $region60
        $region59: #{tpu_custom_call.1} parent=15 // pred_region
          %p621 = scmp.lt.s32.totalorder %s48, 5
          %s622 = scalar_select %p621, %s48, 5
          %s623 = scalar_lea.vmem %s10, %s622
        $region60: #{tpu_custom_call.1} parent=15 // pred_fallthru
          _
        // Predicated region
        $region61: #{tpu_custom_call.1} parent=15 // pred_check
          %p624 = pneg %p358
        $region62: #{tpu_custom_call.1} parent=15 // pred_check_branch
          %626 = sbr.rel (%p624) target = $region64
        $region63: #{tpu_custom_call.1} parent=15 // pred_region
          %p627 = scmp.lt.s32.totalorder %s48, 5
          %s628 = scalar_select %p627, %s48, 5
          %s629 = scalar_lea.vmem %s11, %s628
        $region64: #{tpu_custom_call.1} parent=15 // pred_fallthru
          _
        // Predicated region
        $region65: #{tpu_custom_call.1} parent=15 // pred_check
          %p630 = pneg %p384
        $region66: #{tpu_custom_call.1} parent=15 // pred_check_branch
          %632 = sbr.rel (%p630) target = $region68
        $region67: #{tpu_custom_call.1} parent=15 // pred_region
          %s633 = sand.u32 %s374, 1
          %s634 = scalar_lea.sflag [#allocation19], %s633
          %s635 = sand.u32 %s374, 1
          %s636 = scalar_lea.vmem [#allocation18], %s635
          %s638 = ssub.s32 16, 16
          %639 = vsyncadd %s634, %s638
          %s640 = smul.addr %s48, 16
          %s641 = scalar_lea.hbm %s12, %s640
          %s643 = sshll.u32 %s636, 4
          %s644 = int_to_ptr.vmem [resolvable:$true] %s643
          %646 = dma.hbm_to_vmem [thread:$0]  %s641, 16, %s644, %s634
        $region68: #{tpu_custom_call.1} parent=15 // pred_fallthru
          _
      $region16: #{tpu_custom_call.1} parent=5 // pred_fallthru
        _
      %p647 = scmp.le.s32.totalorder 1, %s40
      %p648 = scmp.lt.s32.totalorder %s40, 13
      %p649 = pnand %p647, %p648
      %p650 = pneg %p649
      // Predicated region
      $region69: #{tpu_custom_call.1} parent=5 // pred_check
        _
      $region70: #{tpu_custom_call.1} parent=5 // pred_check_branch
        %652 = sbr.rel (%p649) target = $region72
      $region71: #{tpu_custom_call.1} parent=5 // pred_region
        %s653 = ssub.s32 %s40, 1
        %s654 = sand.u32 %s65, 1
        %s655 = scalar_lea.sflag [#allocation4], %s654
        %s656 = sand.u32 %s65, 1
        %s657 = smul.addr %s656, 16
        %s658 = scalar_lea.vmem [#allocation3], %s657
        // Predicated region
        $region73: #{tpu_custom_call.1} parent=71 // pred_check
          %p659 = pneg %p78
        $region74: #{tpu_custom_call.1} parent=71 // pred_check_branch
          %661 = sbr.rel (%p659) target = $region76
        $region75: #{tpu_custom_call.1} parent=71 // pred_region
          %662 = dma.done %s655, 256
        $region76: #{tpu_custom_call.1} parent=71 // pred_fallthru
          _
        %s663 = sand.u32 %s45, 1
        %s664 = scalar_lea.sflag [#allocation7], %s663
        %s665 = sand.u32 %s91, 1
        %s666 = smul.addr %s665, 192
        %s667 = scalar_lea.vmem [#allocation6], %s666
        // Predicated region
        $region77: #{tpu_custom_call.1} parent=71 // pred_check
          %p668 = pneg %p104
        $region78: #{tpu_custom_call.1} parent=71 // pred_check_branch
          %670 = sbr.rel (%p668) target = $region80
        $region79: #{tpu_custom_call.1} parent=71 // pred_region
          %671 = dma.done %s664, 3072
        $region80: #{tpu_custom_call.1} parent=71 // pred_fallthru
          _
        %s672 = sand.u32 %s45, 1
        %s673 = scalar_lea.sflag [#allocation7], %s672
        %s674 = sand.u32 %s117, 1
        %s675 = smul.addr %s674, 3
        %s676 = scalar_lea.vmem [#allocation8], %s675
        // Predicated region
        $region81: #{tpu_custom_call.1} parent=71 // pred_check
          %p677 = pneg %p130
        $region82: #{tpu_custom_call.1} parent=71 // pred_check_branch
          %679 = sbr.rel (%p677) target = $region84
        $region83: #{tpu_custom_call.1} parent=71 // pred_region
          %680 = dma.done %s673, 48
        $region84: #{tpu_custom_call.1} parent=71 // pred_fallthru
          _
        %s681 = sand.u32 %s45, 1
        %s682 = scalar_lea.sflag [#allocation10], %s681
        %s683 = sand.u32 %s143, 1
        %s684 = smul.addr %s683, 64
        %s685 = scalar_lea.vmem [#allocation9], %s684
        // Predicated region
        $region85: #{tpu_custom_call.1} parent=71 // pred_check
          %p686 = pneg %p156
        $region86: #{tpu_custom_call.1} parent=71 // pred_check_branch
          %688 = sbr.rel (%p686) target = $region88
        $region87: #{tpu_custom_call.1} parent=71 // pred_region
          %689 = dma.done %s682, 1024
        $region88: #{tpu_custom_call.1} parent=71 // pred_fallthru
          _
        %s690 = sand.u32 %s45, 1
        %s691 = scalar_lea.sflag [#allocation10], %s690
        %s692 = sand.u32 %s195, 1
        %s693 = scalar_lea.vmem [#allocation11], %s692
        // Predicated region
        $region89: #{tpu_custom_call.1} parent=71 // pred_check
          %p694 = pneg %p208
        $region90: #{tpu_custom_call.1} parent=71 // pred_check_branch
          %696 = sbr.rel (%p694) target = $region92
        $region91: #{tpu_custom_call.1} parent=71 // pred_region
          %697 = dma.done %s691, 16
        $region92: #{tpu_custom_call.1} parent=71 // pred_fallthru
          _
        %s698 = sand.u32 %s45, 1
        %s699 = scalar_lea.sflag [#allocation13], %s698
        %s700 = sand.u32 %s221, 1
        %s701 = scalar_lea.vmem [#allocation12], %s700
        // Predicated region
        $region93: #{tpu_custom_call.1} parent=71 // pred_check
          %p702 = pneg %p234
        $region94: #{tpu_custom_call.1} parent=71 // pred_check_branch
          %704 = sbr.rel (%p702) target = $region96
        $region95: #{tpu_custom_call.1} parent=71 // pred_region
          %705 = dma.done %s699, 16
        $region96: #{tpu_custom_call.1} parent=71 // pred_fallthru
          _
        %s706 = sand.u32 %s45, 1
        %s707 = scalar_lea.sflag [#allocation13], %s706
        %s708 = sand.u32 %s247, 1
        %s709 = smul.addr %s708, 256
        %s710 = scalar_lea.vmem [#allocation14], %s709
        // Predicated region
        $region97: #{tpu_custom_call.1} parent=71 // pred_check
          %p711 = pneg %p260
        $region98: #{tpu_custom_call.1} parent=71 // pred_check_branch
          %713 = sbr.rel (%p711) target = $region100
        $region99: #{tpu_custom_call.1} parent=71 // pred_region
          %714 = dma.done %s707, 4096
        $region100: #{tpu_custom_call.1} parent=71 // pred_fallthru
          _
        %s715 = sand.u32 %s45, 1
        %s716 = scalar_lea.sflag [#allocation16], %s715
        %s717 = sand.u32 %s273, 1
        %s718 = smul.addr %s717, 4
        %s719 = scalar_lea.vmem [#allocation15], %s718
        // Predicated region
        $region101: #{tpu_custom_call.1} parent=71 // pred_check
          %p720 = pneg %p286
        $region102: #{tpu_custom_call.1} parent=71 // pred_check_branch
          %722 = sbr.rel (%p720) target = $region104
        $region103: #{tpu_custom_call.1} parent=71 // pred_region
          %723 = dma.done %s716, 64
        $region104: #{tpu_custom_call.1} parent=71 // pred_fallthru
          _
        %s724 = sand.u32 %s45, 1
        %s725 = scalar_lea.sflag [#allocation16], %s724
        %s726 = sand.u32 %s299, 1
        %s727 = smul.addr %s726, 256
        %s728 = scalar_lea.vmem [#allocation17], %s727
        // Predicated region
        $region105: #{tpu_custom_call.1} parent=71 // pred_check
          %p729 = pneg %p312
        $region106: #{tpu_custom_call.1} parent=71 // pred_check_branch
          %731 = sbr.rel (%p729) target = $region108
        $region107: #{tpu_custom_call.1} parent=71 // pred_region
          %732 = dma.done %s725, 4096
        $region108: #{tpu_custom_call.1} parent=71 // pred_fallthru
          _
        %s733 = sand.u32 %s377, 1
        %s734 = scalar_lea.sflag [#allocation19], %s733
        %s735 = sand.u32 %s377, 1
        %s736 = scalar_lea.vmem [#allocation18], %s735
        // Predicated region
        $region109: #{tpu_custom_call.1} parent=71 // pred_check
          %p737 = pneg %p390
        $region110: #{tpu_custom_call.1} parent=71 // pred_check_branch
          %739 = sbr.rel (%p737) target = $region112
        $region111: #{tpu_custom_call.1} parent=71 // pred_region
          %740 = dma.done %s734, 16
        $region112: #{tpu_custom_call.1} parent=71 // pred_fallthru
          _
        %s741 = sand.u32 %s65, 1
        %s742 = scalar_lea.sflag [#allocation4], %s741
        %s743 = sand.u32 %s65, 1
        %s744 = smul.addr %s743, 16
        %s745 = scalar_lea.vmem [#allocation3], %s744
        %p746 = pneg %p78
        %p747 = pneg %p75
        %s748 = sand.u32 %s45, 1
        %s749 = scalar_lea.sflag [#allocation7], %s748
        %s750 = sand.u32 %s91, 1
        %s751 = smul.addr %s750, 192
        %s752 = scalar_lea.vmem [#allocation6], %s751
        %p753 = pneg %p104
        %p754 = pneg %p101
        %s755 = sand.u32 %s45, 1
        %s756 = scalar_lea.sflag [#allocation7], %s755
        %s757 = sand.u32 %s117, 1
        %s758 = smul.addr %s757, 3
        %s759 = scalar_lea.vmem [#allocation8], %s758
        %p760 = pneg %p130
        %p761 = pneg %p127
        %s762 = sand.u32 %s45, 1
        %s763 = scalar_lea.sflag [#allocation10], %s762
        %s764 = sand.u32 %s143, 1
        %s765 = smul.addr %s764, 64
        %s766 = scalar_lea.vmem [#allocation9], %s765
        %p767 = pneg %p156
        %p768 = pneg %p153
        %p769 = scmp.lt.s32.totalorder %s50, 5
        %s770 = scalar_select %p769, %s50, 5
        %s771 = scalar_lea.vmem %s4, %s770
        %p772 = pneg %p182
        %p773 = pneg %p179
        %s774 = sand.u32 %s45, 1
        %s775 = scalar_lea.sflag [#allocation10], %s774
        %s776 = sand.u32 %s195, 1
        %s777 = scalar_lea.vmem [#allocation11], %s776
        %p778 = pneg %p208
        %p779 = pneg %p205
        %s780 = sand.u32 %s45, 1
        %s781 = scalar_lea.sflag [#allocation13], %s780
        %s782 = sand.u32 %s221, 1
        %s783 = scalar_lea.vmem [#allocation12], %s782
        %p784 = pneg %p234
        %p785 = pneg %p231
        %s786 = sand.u32 %s45, 1
        %s787 = scalar_lea.sflag [#allocation13], %s786
        %s788 = sand.u32 %s247, 1
        %s789 = smul.addr %s788, 256
        %s790 = scalar_lea.vmem [#allocation14], %s789
        %p791 = pneg %p260
        %p792 = pneg %p257
        %s793 = sand.u32 %s45, 1
        %s794 = scalar_lea.sflag [#allocation16], %s793
        %s795 = sand.u32 %s273, 1
        %s796 = smul.addr %s795, 4
        %s797 = scalar_lea.vmem [#allocation15], %s796
        %p798 = pneg %p286
        %p799 = pneg %p283
        %s800 = sand.u32 %s45, 1
        %s801 = scalar_lea.sflag [#allocation16], %s800
        %s802 = sand.u32 %s299, 1
        %s803 = smul.addr %s802, 256
        %s804 = scalar_lea.vmem [#allocation17], %s803
        %p805 = pneg %p312
        %p806 = pneg %p309
        %p807 = scmp.lt.s32.totalorder %s50, 5
        %s808 = scalar_select %p807, %s50, 5
        %s809 = scalar_lea.vmem %s10, %s808
        %p810 = pneg %p338
        %p811 = pneg %p335
        %p812 = scmp.lt.s32.totalorder %s50, 5
        %s813 = scalar_select %p812, %s50, 5
        %s814 = scalar_lea.vmem %s11, %s813
        %p815 = pneg %p364
        %p816 = pneg %p361
        %s817 = sand.u32 %s377, 1
        %s818 = scalar_lea.sflag [#allocation19], %s817
        %s819 = sand.u32 %s377, 1
        %s820 = scalar_lea.vmem [#allocation18], %s819
        %p821 = pneg %p390
        %p822 = pneg %p387
        %p823 = pneg %p416
        %p824 = pneg %p413
        %s825 = sand.u32 %s403, 1
        %s826 = scalar_lea.sflag [#allocation5], %s825
        %s827 = sand.u32 %s403, 1
        %s828 = smul.addr %s827, 16
        %s829 = scalar_lea.vmem [#allocation20], %s828
        %p830 = scmp.lt.s32.totalorder %s50, 5
        %s831 = scalar_select %p830, %s50, 5
        %s832 = scalar_lea.vmem %s4, %s831
        %p833 = scmp.lt.s32.totalorder %s50, 5
        %s834 = scalar_select %p833, %s50, 5
        %s835 = scalar_lea.vmem %s10, %s834
        %p836 = scmp.lt.s32.totalorder %s50, 5
        %s837 = scalar_select %p836, %s50, 5
        %s838 = scalar_lea.vmem %s11, %s837
        %p840 = scmp.eq.s32.totalorder %s50, 0
        // Predicated region
        $region113: #{tpu_custom_call.1} parent=71 // pred_check
          %p841 = pneg %p840
        $region114: #{tpu_custom_call.1} parent=71 // pred_check_branch
          %843 = sbr.rel (%p841) target = $region116
        $region115: #{tpu_custom_call.1} parent=71 // pred_region
          %v844 = vld [vmem:[%s658] sm:$0xff]
          %v845 = vld [vmem:[%s658 + $0x8] sm:$0xff]
          %846 = vst [vmem:[#allocation2] sm:$0xff] %v844
          %847 = vst [vmem:[#allocation2 + $0x8] sm:$0xff] %v845
        $region116: #{tpu_custom_call.1} parent=71 // pred_fallthru
          _
        %v848 = vld [vmem:[#allocation2] sm:$0xff]
        %v849 = vld [vmem:[#allocation2 + $0x8] sm:$0xff]
        %v850 = vpack.c.bf16 %v849, %v848
        %v851 = vld [vmem:[%s667] sm:$0xff]
        %v852 = vld [vmem:[%s667 + $0x8] sm:$0xf]
        %v853 = vld [vmem:[%s667 + $0xc] sm:$0xff]
        %v854 = vld [vmem:[%s667 + $0x14] sm:$0xf]
        %v855 = vld [vmem:[%s667 + $0x18] sm:$0xff]
        %v856 = vld [vmem:[%s667 + $0x20] sm:$0xf]
        %v857 = vld [vmem:[%s667 + $0x24] sm:$0xff]
        %v858 = vld [vmem:[%s667 + $0x2c] sm:$0xf]
        %v859 = vld [vmem:[%s667 + $0x30] sm:$0xff]
        %v860 = vld [vmem:[%s667 + $0x38] sm:$0xf]
        %v861 = vld [vmem:[%s667 + $0x3c] sm:$0xff]
        %v862 = vld [vmem:[%s667 + $0x44] sm:$0xf]
        %v863 = vld [vmem:[%s667 + $0x48] sm:$0xff]
        %v864 = vld [vmem:[%s667 + $0x50] sm:$0xf]
        %v865 = vld [vmem:[%s667 + $0x54] sm:$0xff]
        %v866 = vld [vmem:[%s667 + $0x5c] sm:$0xf]
        %v867 = vld [vmem:[%s667 + $0x60] sm:$0xff]
        %v868 = vld [vmem:[%s667 + $0x68] sm:$0xf]
        %v869 = vld [vmem:[%s667 + $0x6c] sm:$0xff]
        %v870 = vld [vmem:[%s667 + $0x74] sm:$0xf]
        %v871 = vld [vmem:[%s667 + $0x78] sm:$0xff]
        %v872 = vld [vmem:[%s667 + $0x80] sm:$0xf]
        %v873 = vld [vmem:[%s667 + $0x84] sm:$0xff]
        %v874 = vld [vmem:[%s667 + $0x8c] sm:$0xf]
        %v875 = vld [vmem:[%s667 + $0x90] sm:$0xff]
        %v876 = vld [vmem:[%s667 + $0x98] sm:$0xf]
        %v877 = vld [vmem:[%s667 + $0x9c] sm:$0xff]
        %v878 = vld [vmem:[%s667 + $0xa4] sm:$0xf]
        %v879 = vld [vmem:[%s667 + $0xa8] sm:$0xff]
        %v880 = vld [vmem:[%s667 + $0xb0] sm:$0xf]
        %v881 = vld [vmem:[%s667 + $0xb4] sm:$0xff]
        %v882 = vld [vmem:[%s667 + $0xbc] sm:$0xf]
        %v883 = vld [vmem:[%s676] sm:$0x7]
        %v885 = vlaneseq
        %v886 = vshrl.u32 %v885, 7
        %v887 = vsub.s32 0, %v886
        %v888 = vrot.slane %v883, %v887
        %v889 = vlaneseq
        %v890 = vshrl.u32 %v889, 7
        %v891 = vsub.s32 1, %v890
        %v892 = vrot.slane %v883, %v891
        %v893 = vlaneseq
        %v894 = vshrl.u32 %v893, 7
        %v895 = vsub.s32 2, %v894
        %v896 = vrot.slane %v883, %v895
        %v932 = vunpack.c.l.b16 %v851
        %v933 = vunpack.c.h.b16 %v851
        %v934 = vunpack.c.l.b16 %v852
        %v935 = vunpack.c.l.b16 %v853
        %v936 = vunpack.c.h.b16 %v853
        %v937 = vunpack.c.l.b16 %v854
        %v938 = vunpack.c.l.b16 %v855
        %v939 = vunpack.c.h.b16 %v855
        %v940 = vunpack.c.l.b16 %v856
        %v941 = vunpack.c.l.b16 %v857
        %v942 = vunpack.c.h.b16 %v857
        %v943 = vunpack.c.l.b16 %v858
        %v944 = vunpack.c.l.b16 %v859
        %v945 = vunpack.c.h.b16 %v859
        %v946 = vunpack.c.l.b16 %v860
        %v947 = vunpack.c.l.b16 %v861
        %v948 = vunpack.c.h.b16 %v861
        %v949 = vunpack.c.l.b16 %v862
        %v950 = vunpack.c.l.b16 %v863
        %v951 = vunpack.c.h.b16 %v863
        %v952 = vunpack.c.l.b16 %v864
        %v953 = vunpack.c.l.b16 %v865
        %v954 = vunpack.c.h.b16 %v865
        %v955 = vunpack.c.l.b16 %v866
        %v956 = vunpack.c.l.b16 %v867
        %v957 = vunpack.c.h.b16 %v867
        %v958 = vunpack.c.l.b16 %v868
        %v959 = vunpack.c.l.b16 %v869
        %v960 = vunpack.c.h.b16 %v869
        %v961 = vunpack.c.l.b16 %v870
        %v962 = vunpack.c.l.b16 %v871
        %v963 = vunpack.c.h.b16 %v871
        %v964 = vunpack.c.l.b16 %v872
        %v965 = vunpack.c.l.b16 %v873
        %v966 = vunpack.c.h.b16 %v873
        %v967 = vunpack.c.l.b16 %v874
        %v968 = vunpack.c.l.b16 %v875
        %v969 = vunpack.c.h.b16 %v875
        %v970 = vunpack.c.l.b16 %v876
        %v971 = vunpack.c.l.b16 %v877
        %v972 = vunpack.c.h.b16 %v877
        %v973 = vunpack.c.l.b16 %v878
        %v974 = vunpack.c.l.b16 %v879
        %v975 = vunpack.c.h.b16 %v879
        %v976 = vunpack.c.l.b16 %v880
        %v977 = vunpack.c.l.b16 %v881
        %v978 = vunpack.c.h.b16 %v881
        %v979 = vunpack.c.l.b16 %v882
        %v980 = vpack.c.b16 %v935, %v932
        %v981 = vpack.c.b16 %v936, %v933
        %v982 = vpack.c.b16 %v937, %v934
        %v983 = vpack.c.b16 %v941, %v938
        %v984 = vpack.c.b16 %v942, %v939
        %v985 = vpack.c.b16 %v943, %v940
        %v986 = vpack.c.b16 %v947, %v944
        %v987 = vpack.c.b16 %v948, %v945
        %v988 = vpack.c.b16 %v949, %v946
        %v989 = vpack.c.b16 %v953, %v950
        %v990 = vpack.c.b16 %v954, %v951
        %v991 = vpack.c.b16 %v955, %v952
        %v992 = vpack.c.b16 %v959, %v956
        %v993 = vpack.c.b16 %v960, %v957
        %v994 = vpack.c.b16 %v961, %v958
        %v995 = vpack.c.b16 %v965, %v962
        %v996 = vpack.c.b16 %v966, %v963
        %v997 = vpack.c.b16 %v967, %v964
        %v998 = vpack.c.b16 %v971, %v968
        %v999 = vpack.c.b16 %v972, %v969
        %v1000 = vpack.c.b16 %v973, %v970
        %v1001 = vpack.c.b16 %v977, %v974
        %v1002 = vpack.c.b16 %v978, %v975
        %v1003 = vpack.c.b16 %v979, %v976
        %1028 = vmatprep.subr.bf16.mxu0 %v1002
        %1029 = vmatpush1.bf16.msra.mxu0 %v1001
        %1030 = vmatprep.subr.bf16.mxu0 %v999
        %1031 = vmatpush1.bf16.msra.mxu0 %v998
        %1032 = vmatprep.subr.bf16.mxu0 %v996
        %1033 = vmatpush1.bf16.msra.mxu0 %v995
        %1034 = vmatprep.subr.bf16.mxu0 %v993
        %1035 = vmatpush1.bf16.msra.mxu0 %v992
        %1036 = vmatprep.subr.bf16.mxu0 %v990
        %1037 = vmatpush1.bf16.msra.mxu0 %v989
        %1038 = vmatprep.subr.bf16.mxu0 %v987
        %1039 = vmatpush1.bf16.msra.mxu0 %v986
        %1040 = vmatprep.subr.bf16.mxu0 %v984
        %1041 = vmatpush1.bf16.msra.mxu0 %v983
        %1042 = vmatprep.subr.bf16.mxu0 %v981
        %1043 = vmatpush1.bf16.msra.mxu0 %v980
        %1044 = vmatprep.subr.bf16.mxu0 0
        %1045 = vmatpush2.bf16.msra.mxu0 0
        %1046 = vmatprep.subr.bf16.mxu0 0
        %1047 = vmatpush2.bf16.msra.mxu0 0
        %1048 = vmatprep.subr.bf16.mxu0 0
        %1049 = vmatpush2.bf16.msra.mxu0 0
        %1050 = vmatprep.subr.bf16.mxu0 0
        %1051 = vmatpush2.bf16.msra.mxu0 0
        %1052 = vmatprep.subr.bf16.mxu0 0
        %1053 = vmatpush2.bf16.msra.mxu0 0
        %1054 = vmatprep.subr.bf16.mxu0 0
        %1055 = vmatpush2.bf16.msra.mxu0 0
        %1056 = vmatprep.subr.bf16.mxu0 0
        %1057 = vmatpush2.bf16.msra.mxu0 0
        %1058 = vmatprep.subr.bf16.mxu0 0
        %1059 = vmatpush2.bf16.msra.mxu0 0
        %1060 = vmatprep.mubr.bf16.mxu0 0
        %1061 = vmatmul.mubr.bf16.gmra.mxu0 %v850
        %v1062 = vpop.f32.mrf.mxu0
        %v1063 = vadd.f32 %v888, %v1062
        %v1064 = vpop.f32.mrf.mxu0
        %v1065 = vadd.f32 %v892, %v1064
        %v1066 = vpop.f32.mrf.mxu0
        %v1067 = vadd.f32 %v888, %v1066
        %v1068 = vpop.f32.mrf.mxu0
        %v1069 = vadd.f32 %v892, %v1068
        %1070 = vdwg.mxu0
        %1071 = vmatprep.subr.bf16.mxu0 0
        %1072 = vmatpush1.bf16.msra.mxu0 %v1003
        %1073 = vmatprep.subr.bf16.mxu0 0
        %1074 = vmatpush1.bf16.msra.mxu0 %v1000
        %1075 = vmatprep.subr.bf16.mxu0 0
        %1076 = vmatpush1.bf16.msra.mxu0 %v997
        %1077 = vmatprep.subr.bf16.mxu0 0
        %1078 = vmatpush1.bf16.msra.mxu0 %v994
        %1079 = vmatprep.subr.bf16.mxu0 0
        %1080 = vmatpush1.bf16.msra.mxu0 %v991
        %1081 = vmatprep.subr.bf16.mxu0 0
        %1082 = vmatpush1.bf16.msra.mxu0 %v988
        %1083 = vmatprep.subr.bf16.mxu0 0
        %1084 = vmatpush1.bf16.msra.mxu0 %v985
        %1085 = vmatprep.subr.bf16.mxu0 0
        %1086 = vmatpush1.bf16.msra.mxu0 %v982
        %1087 = vmatprep.subr.bf16.mxu0 0
        %1088 = vmatpush2.bf16.msra.mxu0 0
        %1089 = vmatprep.subr.bf16.mxu0 0
        %1090 = vmatpush2.bf16.msra.mxu0 0
        %1091 = vmatprep.subr.bf16.mxu0 0
        %1092 = vmatpush2.bf16.msra.mxu0 0
        %1093 = vmatprep.subr.bf16.mxu0 0
        %1094 = vmatpush2.bf16.msra.mxu0 0
        %1095 = vmatprep.subr.bf16.mxu0 0
        %1096 = vmatpush2.bf16.msra.mxu0 0
        %1097 = vmatprep.subr.bf16.mxu0 0
        %1098 = vmatpush2.bf16.msra.mxu0 0
        %1099 = vmatprep.subr.bf16.mxu0 0
        %1100 = vmatpush2.bf16.msra.mxu0 0
        %1101 = vmatprep.subr.bf16.mxu0 0
        %1102 = vmatpush2.bf16.msra.mxu0 0
        %1103 = vmatprep.mubr.bf16.mxu0 0
        %1104 = vmatmul.mubr.bf16.gmra.mxu0 %v850
        %v1105 = vpop.f32.mrf.mxu0
        %v1106 = vadd.f32 %v896, %v1105
        %v1107 = vpop.f32.mrf.mxu0
        %v1108 = vpop.f32.mrf.mxu0
        %v1109 = vadd.f32 %v896, %v1108
        %v1110 = vpop.f32.mrf.mxu0
        %1111 = vdwg.mxu0
        %v1112 = vld [vmem:[%s685] sm:$0xf]
        %v1113 = vld [vmem:[%s685 + $0x4] sm:$0xf]
        %v1114 = vld [vmem:[%s685 + $0x8] sm:$0xf]
        %v1115 = vld [vmem:[%s685 + $0xc] sm:$0xf]
        %v1116 = vld [vmem:[%s685 + $0x10] sm:$0xf]
        %v1117 = vld [vmem:[%s685 + $0x14] sm:$0xf]
        %v1118 = vld [vmem:[%s685 + $0x18] sm:$0xf]
        %v1119 = vld [vmem:[%s685 + $0x1c] sm:$0xf]
        %v1120 = vld [vmem:[%s685 + $0x20] sm:$0xf]
        %v1121 = vld [vmem:[%s685 + $0x24] sm:$0xf]
        %v1122 = vld [vmem:[%s685 + $0x28] sm:$0xf]
        %v1123 = vld [vmem:[%s685 + $0x2c] sm:$0xf]
        %v1124 = vld [vmem:[%s685 + $0x30] sm:$0xf]
        %v1125 = vld [vmem:[%s685 + $0x34] sm:$0xf]
        %v1126 = vld [vmem:[%s685 + $0x38] sm:$0xf]
        %v1127 = vld [vmem:[%s685 + $0x3c] sm:$0xf]
        %v1128 = vpack.c.bf16 %v1067, %v1063
        %v1129 = vpack.c.bf16 %v1069, %v1065
        %v1130 = vpack.c.bf16 %v1109, %v1106
        %vm1131 = vcmask 261120
        %v1133 = vsel %vm1131, %v1128, 0
        %v1136 = vsel %vm1131, %v1129, 0
        %1138 = vmatprep.subr.bf16.mxu0 0
        %1139 = vmatpush1.bf16.xpose.msra.mxu0 0
        %1140 = vmatprep.subr.bf16.mxu0 0
        %1141 = vmatpush1.bf16.xpose.msra.mxu0 0
        %1142 = vmatprep.subr.bf16.mxu0 0
        %1143 = vmatpush1.bf16.xpose.msra.mxu0 0
        %1144 = vmatprep.subr.bf16.mxu0 0
        %1145 = vmatpush1.bf16.xpose.msra.mxu0 0
        %1146 = vmatprep.subr.bf16.mxu0 0
        %1147 = vmatpush1.bf16.xpose.msra.mxu0 0
        %1148 = vmatprep.subr.bf16.mxu0 0
        %1149 = vmatpush1.bf16.xpose.msra.mxu0 0
        %1150 = vmatprep.subr.bf16.mxu0 0
        %1151 = vmatpush1.bf16.xpose.msra.mxu0 0
        %1152 = vmatprep.subr.bf16.mxu0 0
        %1153 = vmatpush1.bf16.xpose.msra.mxu0 %v1136
        %1154 = vmatprep.subr.bf16.mxu0 0
        %1155 = vmatpush2.bf16.xpose.msra.mxu0 0
        %1156 = vmatprep.subr.bf16.mxu0 0
        %1157 = vmatpush2.bf16.xpose.msra.mxu0 0
        %1158 = vmatprep.subr.bf16.mxu0 0
        %1159 = vmatpush2.bf16.xpose.msra.mxu0 0
        %1160 = vmatprep.subr.bf16.mxu0 0
        %1161 = vmatpush2.bf16.xpose.msra.mxu0 0
        %1162 = vmatprep.subr.bf16.mxu0 0
        %1163 = vmatpush2.bf16.xpose.msra.mxu0 0
        %1164 = vmatprep.subr.bf16.mxu0 0
        %1165 = vmatpush2.bf16.xpose.msra.mxu0 0
        %1166 = vmatprep.subr.bf16.mxu0 0
        %1167 = vmatpush2.bf16.xpose.msra.mxu0 0
        %1168 = vmatprep.subr.bf16.mxu0 0
        %1169 = vmatpush2.bf16.xpose.msra.mxu0 0
        %1170 = vmatprep.mubr.bf16.mxu0 0
        %1171 = vmatmul.mubr.bf16.gmra.mxu0 %v1133
        %v1172 = vpop.f32.mrf.mxu0
        %v1173 = vadd.f32 0.0, %v1172
        %v1174 = vpop.f32.mrf.mxu0
        %v1175 = vpop.f32.mrf.mxu0
        %v1176 = vadd.f32 0.0, %v1175
        %v1177 = vpop.f32.mrf.mxu0
        %1178 = vdwg.mxu0
        %v1179 = vmul.f32 %v1173, 0.17677669
        %v1180 = vmul.f32 %v1176, 0.17677669
        %vm1181 = vcmask 130048
        %v1182 = vsel %vm1181, %v1179, -inf
        %1183 = vmax.xlane.f32.xlu0 %v1182
        %v1184 = vpop.xlane.xlu0 %1183
        %v1185 = vsel %vm1181, %v1180, -inf
        %1186 = vmax.xlane.f32.xlu0 %v1185
        %v1187 = vpop.xlane.xlu0 %1186
        %v1188 = vsub.f32 %v1179, %v1184
        %v1189 = vsub.f32 %v1180, %v1187
        %v1190 = vmul.f32 %v1188, 1.442695
        %v1191 = vpow.pop %v1190
        %v1192 = vmul.f32 %v1189, 1.442695
        %v1193 = vpow.pop %v1192
        %v1194 = vsel %vm1181, %v1191, 0.0
        %1195 = vadd.xlane.f32.xlu0 %v1194
        %v1196 = vpop.xlane.xlu0 %1195
        %v1197 = vsel %vm1181, %v1193, 0.0
        %1198 = vadd.xlane.f32.xlu0 %v1197
        %v1199 = vpop.xlane.xlu0 %1198
        %v1200 = vrcp.pop %v1196
        %v1201 = vrcp.pop %v1199
        %v1202 = vmul.f32 %v1191, %v1200
        %v1203 = vmul.f32 %v1193, %v1201
        %v1204 = vpack.c.bf16 %v1203, %v1202
        %v1206 = vsel %vm1181, %v1204, 0
        %1208 = vmatprep.subr.bf16.mxu0 0
        %1209 = vmatpush1.bf16.msra.mxu0 0
        %1210 = vmatprep.subr.bf16.mxu0 0
        %1211 = vmatpush1.bf16.msra.mxu0 0
        %1212 = vmatprep.subr.bf16.mxu0 0
        %1213 = vmatpush1.bf16.msra.mxu0 0
        %1214 = vmatprep.subr.bf16.mxu0 0
        %1215 = vmatpush1.bf16.msra.mxu0 0
        %1216 = vmatprep.subr.bf16.mxu0 0
        %1217 = vmatpush1.bf16.msra.mxu0 0
        %1218 = vmatprep.subr.bf16.mxu0 0
        %1219 = vmatpush1.bf16.msra.mxu0 0
        %1220 = vmatprep.subr.bf16.mxu0 0
        %1221 = vmatpush1.bf16.msra.mxu0 0
        %1222 = vmatprep.subr.bf16.mxu0 0
        %1223 = vmatpush1.bf16.msra.mxu0 %v1130
        %1224 = vmatprep.subr.bf16.mxu0 0
        %1225 = vmatpush2.bf16.msra.mxu0 0
        %1226 = vmatprep.subr.bf16.mxu0 0
        %1227 = vmatpush2.bf16.msra.mxu0 0
        %1228 = vmatprep.subr.bf16.mxu0 0
        %1229 = vmatpush2.bf16.msra.mxu0 0
        %1230 = vmatprep.subr.bf16.mxu0 0
        %1231 = vmatpush2.bf16.msra.mxu0 0
        %1232 = vmatprep.subr.bf16.mxu0 0
        %1233 = vmatpush2.bf16.msra.mxu0 0
        %1234 = vmatprep.subr.bf16.mxu0 0
        %1235 = vmatpush2.bf16.msra.mxu0 0
        %1236 = vmatprep.subr.bf16.mxu0 0
        %1237 = vmatpush2.bf16.msra.mxu0 0
        %1238 = vmatprep.subr.bf16.mxu0 0
        %1239 = vmatpush2.bf16.msra.mxu0 0
        %1240 = vmatprep.mubr.bf16.mxu0 0
        %1241 = vmatmul.mubr.bf16.gmra.mxu0 %v1206
        %v1242 = vpop.f32.mrf.mxu0
        %v1243 = vadd.f32 0.0, %v1242
        %v1244 = vpop.f32.mrf.mxu0
        %v1245 = vpop.f32.mrf.mxu0
        %v1246 = vadd.f32 0.0, %v1245
        %v1247 = vpop.f32.mrf.mxu0
        %1248 = vdwg.mxu0
        %v1249 = vpack.c.bf16 %v1246, %v1243
        %1251 = vrot.lane.b32.xlu0 %v1128, 96
        %v1252 = vpop.permute.xlu0 %1251
        %1254 = vrot.lane.b32.xlu0 %v1129, 96
        %v1255 = vpop.permute.xlu0 %1254
        %v1257 = vsel %vm1131, %v1252, 0
        %v1260 = vsel %vm1131, %v1255, 0
        %1262 = vmatprep.subr.bf16.mxu0 0
        %1263 = vmatpush1.bf16.xpose.msra.mxu0 0
        %1264 = vmatprep.subr.bf16.mxu0 0
        %1265 = vmatpush1.bf16.xpose.msra.mxu0 0
        %1266 = vmatprep.subr.bf16.mxu0 0
        %1267 = vmatpush1.bf16.xpose.msra.mxu0 0
        %1268 = vmatprep.subr.bf16.mxu0 0
        %1269 = vmatpush1.bf16.xpose.msra.mxu0 0
        %1270 = vmatprep.subr.bf16.mxu0 0
        %1271 = vmatpush1.bf16.xpose.msra.mxu0 0
        %1272 = vmatprep.subr.bf16.mxu0 0
        %1273 = vmatpush1.bf16.xpose.msra.mxu0 0
        %1274 = vmatprep.subr.bf16.mxu0 0
        %1275 = vmatpush1.bf16.xpose.msra.mxu0 0
        %1276 = vmatprep.subr.bf16.mxu0 0
        %1277 = vmatpush1.bf16.xpose.msra.mxu0 %v1260
        %1278 = vmatprep.subr.bf16.mxu0 0
        %1279 = vmatpush2.bf16.xpose.msra.mxu0 0
        %1280 = vmatprep.subr.bf16.mxu0 0
        %1281 = vmatpush2.bf16.xpose.msra.mxu0 0
        %1282 = vmatprep.subr.bf16.mxu0 0
        %1283 = vmatpush2.bf16.xpose.msra.mxu0 0
        %1284 = vmatprep.subr.bf16.mxu0 0
        %1285 = vmatpush2.bf16.xpose.msra.mxu0 0
        %1286 = vmatprep.subr.bf16.mxu0 0
        %1287 = vmatpush2.bf16.xpose.msra.mxu0 0
        %1288 = vmatprep.subr.bf16.mxu0 0
        %1289 = vmatpush2.bf16.xpose.msra.mxu0 0
        %1290 = vmatprep.subr.bf16.mxu0 0
        %1291 = vmatpush2.bf16.xpose.msra.mxu0 0
        %1292 = vmatprep.subr.bf16.mxu0 0
        %1293 = vmatpush2.bf16.xpose.msra.mxu0 0
        %1294 = vmatprep.mubr.bf16.mxu0 0
        %1295 = vmatmul.mubr.bf16.gmra.mxu0 %v1257
        %v1296 = vpop.f32.mrf.mxu0
        %v1297 = vadd.f32 0.0, %v1296
        %v1298 = vpop.f32.mrf.mxu0
        %v1299 = vpop.f32.mrf.mxu0
        %v1300 = vadd.f32 0.0, %v1299
        %v1301 = vpop.f32.mrf.mxu0
        %1302 = vdwg.mxu0
        %v1303 = vmul.f32 %v1297, 0.17677669
        %v1304 = vmul.f32 %v1300, 0.17677669
        %v1305 = vsel %vm1181, %v1303, -inf
        %1306 = vmax.xlane.f32.xlu0 %v1305
        %v1307 = vpop.xlane.xlu0 %1306
        %v1308 = vsel %vm1181, %v1304, -inf
        %1309 = vmax.xlane.f32.xlu0 %v1308
        %v1310 = vpop.xlane.xlu0 %1309
        %v1311 = vsub.f32 %v1303, %v1307
        %v1312 = vsub.f32 %v1304, %v1310
        %v1313 = vmul.f32 %v1311, 1.442695
        %v1314 = vpow.pop %v1313
        %v1315 = vmul.f32 %v1312, 1.442695
        %v1316 = vpow.pop %v1315
        %v1317 = vsel %vm1181, %v1314, 0.0
        %1318 = vadd.xlane.f32.xlu0 %v1317
        %v1319 = vpop.xlane.xlu0 %1318
        %v1320 = vsel %vm1181, %v1316, 0.0
        %1321 = vadd.xlane.f32.xlu0 %v1320
        %v1322 = vpop.xlane.xlu0 %1321
        %v1323 = vrcp.pop %v1319
        %v1324 = vrcp.pop %v1322
        %v1325 = vmul.f32 %v1314, %v1323
        %v1326 = vmul.f32 %v1316, %v1324
        %v1327 = vpack.c.bf16 %v1326, %v1325
        %1329 = vrot.lane.b32.xlu0 %v1130, 96
        %v1330 = vpop.permute.xlu0 %1329
        %v1333 = vsel %vm1181, %v1327, 0
        %1335 = vmatprep.subr.bf16.mxu0 0
        %1336 = vmatpush1.bf16.msra.mxu0 0
        %1337 = vmatprep.subr.bf16.mxu0 0
        %1338 = vmatpush1.bf16.msra.mxu0 0
        %1339 = vmatprep.subr.bf16.mxu0 0
        %1340 = vmatpush1.bf16.msra.mxu0 0
        %1341 = vmatprep.subr.bf16.mxu0 0
        %1342 = vmatpush1.bf16.msra.mxu0 0
        %1343 = vmatprep.subr.bf16.mxu0 0
        %1344 = vmatpush1.bf16.msra.mxu0 0
        %1345 = vmatprep.subr.bf16.mxu0 0
        %1346 = vmatpush1.bf16.msra.mxu0 0
        %1347 = vmatprep.subr.bf16.mxu0 0
        %1348 = vmatpush1.bf16.msra.mxu0 0
        %1349 = vmatprep.subr.bf16.mxu0 0
        %1350 = vmatpush1.bf16.msra.mxu0 %v1330
        %1351 = vmatprep.subr.bf16.mxu0 0
        %1352 = vmatpush2.bf16.msra.mxu0 0
        %1353 = vmatprep.subr.bf16.mxu0 0
        %1354 = vmatpush2.bf16.msra.mxu0 0
        %1355 = vmatprep.subr.bf16.mxu0 0
        %1356 = vmatpush2.bf16.msra.mxu0 0
        %1357 = vmatprep.subr.bf16.mxu0 0
        %1358 = vmatpush2.bf16.msra.mxu0 0
        %1359 = vmatprep.subr.bf16.mxu0 0
        %1360 = vmatpush2.bf16.msra.mxu0 0
        %1361 = vmatprep.subr.bf16.mxu0 0
        %1362 = vmatpush2.bf16.msra.mxu0 0
        %1363 = vmatprep.subr.bf16.mxu0 0
        %1364 = vmatpush2.bf16.msra.mxu0 0
        %1365 = vmatprep.subr.bf16.mxu0 0
        %1366 = vmatpush2.bf16.msra.mxu0 0
        %1367 = vmatprep.mubr.bf16.mxu0 0
        %1368 = vmatmul.mubr.bf16.gmra.mxu0 %v1333
        %v1369 = vpop.f32.mrf.mxu0
        %v1370 = vadd.f32 0.0, %v1369
        %v1371 = vpop.f32.mrf.mxu0
        %v1372 = vpop.f32.mrf.mxu0
        %v1373 = vadd.f32 0.0, %v1372
        %v1374 = vpop.f32.mrf.mxu0
        %1375 = vdwg.mxu0
        %v1376 = vpack.c.bf16 %v1373, %v1370
        %v1381 = vunpack.c.l.b16 %v1116
        %v1382 = vunpack.c.l.b16 %v1117
        %v1383 = vunpack.c.l.b16 %v1118
        %v1384 = vunpack.c.l.b16 %v1119
        %v1385 = vpack.c.b16 %v1382, %v1381
        %v1386 = vpack.c.b16 %v1384, %v1383
        %v1390 = vsel %vm1131, %v1376, 0
        %1392 = vmatprep.subr.bf16.mxu0 0
        %1393 = vmatpush1.bf16.msra.mxu0 0
        %1394 = vmatprep.subr.bf16.mxu0 0
        %1395 = vmatpush1.bf16.msra.mxu0 0
        %1396 = vmatprep.subr.bf16.mxu0 0
        %1397 = vmatpush1.bf16.msra.mxu0 0
        %1398 = vmatprep.subr.bf16.mxu0 0
        %1399 = vmatpush1.bf16.msra.mxu0 0
        %1400 = vmatprep.subr.bf16.mxu0 0
        %1401 = vmatpush1.bf16.msra.mxu0 0
        %1402 = vmatprep.subr.bf16.mxu0 0
        %1403 = vmatpush1.bf16.msra.mxu0 0
        %1404 = vmatprep.subr.bf16.mxu0 0
        %1405 = vmatpush1.bf16.msra.mxu0 %v1386
        %1406 = vmatprep.subr.bf16.mxu0 0
        %1407 = vmatpush1.bf16.msra.mxu0 %v1385
        %1408 = vmatprep.subr.bf16.mxu0 0
        %1409 = vmatpush2.bf16.msra.mxu0 0
        %1410 = vmatprep.subr.bf16.mxu0 0
        %1411 = vmatpush2.bf16.msra.mxu0 0
        %1412 = vmatprep.subr.bf16.mxu0 0
        %1413 = vmatpush2.bf16.msra.mxu0 0
        %1414 = vmatprep.subr.bf16.mxu0 0
        %1415 = vmatpush2.bf16.msra.mxu0 0
        %1416 = vmatprep.subr.bf16.mxu0 0
        %1417 = vmatpush2.bf16.msra.mxu0 0
        %1418 = vmatprep.subr.bf16.mxu0 0
        %1419 = vmatpush2.bf16.msra.mxu0 0
        %1420 = vmatprep.subr.bf16.mxu0 0
        %1421 = vmatpush2.bf16.msra.mxu0 0
        %1422 = vmatprep.subr.bf16.mxu0 0
        %1423 = vmatpush2.bf16.msra.mxu0 0
        %1424 = vmatprep.mubr.bf16.mxu0 0
        %1425 = vmatmul.mubr.bf16.gmra.mxu0 %v1390
        %v1426 = vpop.f32.mrf.mxu0
        %v1427 = vadd.f32 0.0, %v1426
        %v1428 = vpop.f32.mrf.mxu0
        %v1429 = vpop.f32.mrf.mxu0
        %v1430 = vadd.f32 0.0, %v1429
        %v1431 = vpop.f32.mrf.mxu0
        %1432 = vdwg.mxu0
        %v1437 = vunpack.c.l.b16 %v1112
        %v1438 = vunpack.c.l.b16 %v1113
        %v1439 = vunpack.c.l.b16 %v1114
        %v1440 = vunpack.c.l.b16 %v1115
        %v1441 = vpack.c.b16 %v1438, %v1437
        %v1442 = vpack.c.b16 %v1440, %v1439
        %v1446 = vsel %vm1131, %v1249, 0
        %1448 = vmatprep.subr.bf16.mxu0 0
        %1449 = vmatpush1.bf16.msra.mxu0 0
        %1450 = vmatprep.subr.bf16.mxu0 0
        %1451 = vmatpush1.bf16.msra.mxu0 0
        %1452 = vmatprep.subr.bf16.mxu0 0
        %1453 = vmatpush1.bf16.msra.mxu0 0
        %1454 = vmatprep.subr.bf16.mxu0 0
        %1455 = vmatpush1.bf16.msra.mxu0 0
        %1456 = vmatprep.subr.bf16.mxu0 0
        %1457 = vmatpush1.bf16.msra.mxu0 0
        %1458 = vmatprep.subr.bf16.mxu0 0
        %1459 = vmatpush1.bf16.msra.mxu0 0
        %1460 = vmatprep.subr.bf16.mxu0 0
        %1461 = vmatpush1.bf16.msra.mxu0 %v1442
        %1462 = vmatprep.subr.bf16.mxu0 0
        %1463 = vmatpush1.bf16.msra.mxu0 %v1441
        %1464 = vmatprep.subr.bf16.mxu0 0
        %1465 = vmatpush2.bf16.msra.mxu0 0
        %1466 = vmatprep.subr.bf16.mxu0 0
        %1467 = vmatpush2.bf16.msra.mxu0 0
        %1468 = vmatprep.subr.bf16.mxu0 0
        %1469 = vmatpush2.bf16.msra.mxu0 0
        %1470 = vmatprep.subr.bf16.mxu0 0
        %1471 = vmatpush2.bf16.msra.mxu0 0
        %1472 = vmatprep.subr.bf16.mxu0 0
        %1473 = vmatpush2.bf16.msra.mxu0 0
        %1474 = vmatprep.subr.bf16.mxu0 0
        %1475 = vmatpush2.bf16.msra.mxu0 0
        %1476 = vmatprep.subr.bf16.mxu0 0
        %1477 = vmatpush2.bf16.msra.mxu0 0
        %1478 = vmatprep.subr.bf16.mxu0 0
        %1479 = vmatpush2.bf16.msra.mxu0 0
        %1480 = vmatprep.mubr.bf16.mxu0 0
        %1481 = vmatmul.mubr.bf16.gmra.mxu0 %v1446
        %v1482 = vpop.f32.mrf.mxu0
        %v1483 = vadd.f32 %v1427, %v1482
        %v1484 = vpop.f32.mrf.mxu0
        %v1485 = vpop.f32.mrf.mxu0
        %v1486 = vadd.f32 %v1430, %v1485
        %v1487 = vpop.f32.mrf.mxu0
        %1488 = vdwg.mxu0
        %1489 = vrot.lane.b32.xlu0 %v1128, 64
        %v1490 = vpop.permute.xlu0 %1489
        %1491 = vrot.lane.b32.xlu0 %v1129, 64
        %v1492 = vpop.permute.xlu0 %1491
        %v1494 = vsel %vm1131, %v1490, 0
        %v1497 = vsel %vm1131, %v1492, 0
        %1499 = vmatprep.subr.bf16.mxu0 0
        %1500 = vmatpush1.bf16.xpose.msra.mxu0 0
        %1501 = vmatprep.subr.bf16.mxu0 0
        %1502 = vmatpush1.bf16.xpose.msra.mxu0 0
        %1503 = vmatprep.subr.bf16.mxu0 0
        %1504 = vmatpush1.bf16.xpose.msra.mxu0 0
        %1505 = vmatprep.subr.bf16.mxu0 0
        %1506 = vmatpush1.bf16.xpose.msra.mxu0 0
        %1507 = vmatprep.subr.bf16.mxu0 0
        %1508 = vmatpush1.bf16.xpose.msra.mxu0 0
        %1509 = vmatprep.subr.bf16.mxu0 0
        %1510 = vmatpush1.bf16.xpose.msra.mxu0 0
        %1511 = vmatprep.subr.bf16.mxu0 0
        %1512 = vmatpush1.bf16.xpose.msra.mxu0 0
        %1513 = vmatprep.subr.bf16.mxu0 0
        %1514 = vmatpush1.bf16.xpose.msra.mxu0 %v1497
        %1515 = vmatprep.subr.bf16.mxu0 0
        %1516 = vmatpush2.bf16.xpose.msra.mxu0 0
        %1517 = vmatprep.subr.bf16.mxu0 0
        %1518 = vmatpush2.bf16.xpose.msra.mxu0 0
        %1519 = vmatprep.subr.bf16.mxu0 0
        %1520 = vmatpush2.bf16.xpose.msra.mxu0 0
        %1521 = vmatprep.subr.bf16.mxu0 0
        %1522 = vmatpush2.bf16.xpose.msra.mxu0 0
        %1523 = vmatprep.subr.bf16.mxu0 0
        %1524 = vmatpush2.bf16.xpose.msra.mxu0 0
        %1525 = vmatprep.subr.bf16.mxu0 0
        %1526 = vmatpush2.bf16.xpose.msra.mxu0 0
        %1527 = vmatprep.subr.bf16.mxu0 0
        %1528 = vmatpush2.bf16.xpose.msra.mxu0 0
        %1529 = vmatprep.subr.bf16.mxu0 0
        %1530 = vmatpush2.bf16.xpose.msra.mxu0 0
        %1531 = vmatprep.mubr.bf16.mxu0 0
        %1532 = vmatmul.mubr.bf16.gmra.mxu0 %v1494
        %v1533 = vpop.f32.mrf.mxu0
        %v1534 = vadd.f32 0.0, %v1533
        %v1535 = vpop.f32.mrf.mxu0
        %v1536 = vpop.f32.mrf.mxu0
        %v1537 = vadd.f32 0.0, %v1536
        %v1538 = vpop.f32.mrf.mxu0
        %1539 = vdwg.mxu0
        %v1540 = vmul.f32 %v1534, 0.17677669
        %v1541 = vmul.f32 %v1537, 0.17677669
        %v1542 = vsel %vm1181, %v1540, -inf
        %1543 = vmax.xlane.f32.xlu0 %v1542
        %v1544 = vpop.xlane.xlu0 %1543
        %v1545 = vsel %vm1181, %v1541, -inf
        %1546 = vmax.xlane.f32.xlu0 %v1545
        %v1547 = vpop.xlane.xlu0 %1546
        %v1548 = vsub.f32 %v1540, %v1544
        %v1549 = vsub.f32 %v1541, %v1547
        %v1550 = vmul.f32 %v1548, 1.442695
        %v1551 = vpow.pop %v1550
        %v1552 = vmul.f32 %v1549, 1.442695
        %v1553 = vpow.pop %v1552
        %v1554 = vsel %vm1181, %v1551, 0.0
        %1555 = vadd.xlane.f32.xlu0 %v1554
        %v1556 = vpop.xlane.xlu0 %1555
        %v1557 = vsel %vm1181, %v1553, 0.0
        %1558 = vadd.xlane.f32.xlu0 %v1557
        %v1559 = vpop.xlane.xlu0 %1558
        %v1560 = vrcp.pop %v1556
        %v1561 = vrcp.pop %v1559
        %v1562 = vmul.f32 %v1551, %v1560
        %v1563 = vmul.f32 %v1553, %v1561
        %v1564 = vpack.c.bf16 %v1563, %v1562
        %1565 = vrot.lane.b32.xlu0 %v1130, 64
        %v1566 = vpop.permute.xlu0 %1565
        %v1569 = vsel %vm1181, %v1564, 0
        %1571 = vmatprep.subr.bf16.mxu0 0
        %1572 = vmatpush1.bf16.msra.mxu0 0
        %1573 = vmatprep.subr.bf16.mxu0 0
        %1574 = vmatpush1.bf16.msra.mxu0 0
        %1575 = vmatprep.subr.bf16.mxu0 0
        %1576 = vmatpush1.bf16.msra.mxu0 0
        %1577 = vmatprep.subr.bf16.mxu0 0
        %1578 = vmatpush1.bf16.msra.mxu0 0
        %1579 = vmatprep.subr.bf16.mxu0 0
        %1580 = vmatpush1.bf16.msra.mxu0 0
        %1581 = vmatprep.subr.bf16.mxu0 0
        %1582 = vmatpush1.bf16.msra.mxu0 0
        %1583 = vmatprep.subr.bf16.mxu0 0
        %1584 = vmatpush1.bf16.msra.mxu0 0
        %1585 = vmatprep.subr.bf16.mxu0 0
        %1586 = vmatpush1.bf16.msra.mxu0 %v1566
        %1587 = vmatprep.subr.bf16.mxu0 0
        %1588 = vmatpush2.bf16.msra.mxu0 0
        %1589 = vmatprep.subr.bf16.mxu0 0
        %1590 = vmatpush2.bf16.msra.mxu0 0
        %1591 = vmatprep.subr.bf16.mxu0 0
        %1592 = vmatpush2.bf16.msra.mxu0 0
        %1593 = vmatprep.subr.bf16.mxu0 0
        %1594 = vmatpush2.bf16.msra.mxu0 0
        %1595 = vmatprep.subr.bf16.mxu0 0
        %1596 = vmatpush2.bf16.msra.mxu0 0
        %1597 = vmatprep.subr.bf16.mxu0 0
        %1598 = vmatpush2.bf16.msra.mxu0 0
        %1599 = vmatprep.subr.bf16.mxu0 0
        %1600 = vmatpush2.bf16.msra.mxu0 0
        %1601 = vmatprep.subr.bf16.mxu0 0
        %1602 = vmatpush2.bf16.msra.mxu0 0
        %1603 = vmatprep.mubr.bf16.mxu0 0
        %1604 = vmatmul.mubr.bf16.gmra.mxu0 %v1569
        %v1605 = vpop.f32.mrf.mxu0
        %v1606 = vadd.f32 0.0, %v1605
        %v1607 = vpop.f32.mrf.mxu0
        %v1608 = vpop.f32.mrf.mxu0
        %v1609 = vadd.f32 0.0, %v1608
        %v1610 = vpop.f32.mrf.mxu0
        %1611 = vdwg.mxu0
        %v1612 = vpack.c.bf16 %v1609, %v1606
        %v1617 = vunpack.c.l.b16 %v1120
        %v1618 = vunpack.c.l.b16 %v1121
        %v1619 = vunpack.c.l.b16 %v1122
        %v1620 = vunpack.c.l.b16 %v1123
        %v1621 = vpack.c.b16 %v1618, %v1617
        %v1622 = vpack.c.b16 %v1620, %v1619
        %v1626 = vsel %vm1131, %v1612, 0
        %1628 = vmatprep.subr.bf16.mxu0 0
        %1629 = vmatpush1.bf16.msra.mxu0 0
        %1630 = vmatprep.subr.bf16.mxu0 0
        %1631 = vmatpush1.bf16.msra.mxu0 0
        %1632 = vmatprep.subr.bf16.mxu0 0
        %1633 = vmatpush1.bf16.msra.mxu0 0
        %1634 = vmatprep.subr.bf16.mxu0 0
        %1635 = vmatpush1.bf16.msra.mxu0 0
        %1636 = vmatprep.subr.bf16.mxu0 0
        %1637 = vmatpush1.bf16.msra.mxu0 0
        %1638 = vmatprep.subr.bf16.mxu0 0
        %1639 = vmatpush1.bf16.msra.mxu0 0
        %1640 = vmatprep.subr.bf16.mxu0 0
        %1641 = vmatpush1.bf16.msra.mxu0 %v1622
        %1642 = vmatprep.subr.bf16.mxu0 0
        %1643 = vmatpush1.bf16.msra.mxu0 %v1621
        %1644 = vmatprep.subr.bf16.mxu0 0
        %1645 = vmatpush2.bf16.msra.mxu0 0
        %1646 = vmatprep.subr.bf16.mxu0 0
        %1647 = vmatpush2.bf16.msra.mxu0 0
        %1648 = vmatprep.subr.bf16.mxu0 0
        %1649 = vmatpush2.bf16.msra.mxu0 0
        %1650 = vmatprep.subr.bf16.mxu0 0
        %1651 = vmatpush2.bf16.msra.mxu0 0
        %1652 = vmatprep.subr.bf16.mxu0 0
        %1653 = vmatpush2.bf16.msra.mxu0 0
        %1654 = vmatprep.subr.bf16.mxu0 0
        %1655 = vmatpush2.bf16.msra.mxu0 0
        %1656 = vmatprep.subr.bf16.mxu0 0
        %1657 = vmatpush2.bf16.msra.mxu0 0
        %1658 = vmatprep.subr.bf16.mxu0 0
        %1659 = vmatpush2.bf16.msra.mxu0 0
        %1660 = vmatprep.mubr.bf16.mxu0 0
        %1661 = vmatmul.mubr.bf16.gmra.mxu0 %v1626
        %v1662 = vpop.f32.mrf.mxu0
        %v1663 = vadd.f32 0.0, %v1662
        %v1664 = vpop.f32.mrf.mxu0
        %v1665 = vpop.f32.mrf.mxu0
        %v1666 = vadd.f32 0.0, %v1665
        %v1667 = vpop.f32.mrf.mxu0
        %1668 = vdwg.mxu0
        %v1669 = vadd.f32 %v1483, %v1663
        %v1670 = vadd.f32 %v1486, %v1666
        %1671 = vrot.lane.b32.xlu0 %v1128, 32
        %v1672 = vpop.permute.xlu0 %1671
        %1673 = vrot.lane.b32.xlu0 %v1129, 32
        %v1674 = vpop.permute.xlu0 %1673
        %v1676 = vsel %vm1131, %v1672, 0
        %v1679 = vsel %vm1131, %v1674, 0
        %1681 = vmatprep.subr.bf16.mxu0 0
        %1682 = vmatpush1.bf16.xpose.msra.mxu0 0
        %1683 = vmatprep.subr.bf16.mxu0 0
        %1684 = vmatpush1.bf16.xpose.msra.mxu0 0
        %1685 = vmatprep.subr.bf16.mxu0 0
        %1686 = vmatpush1.bf16.xpose.msra.mxu0 0
        %1687 = vmatprep.subr.bf16.mxu0 0
        %1688 = vmatpush1.bf16.xpose.msra.mxu0 0
        %1689 = vmatprep.subr.bf16.mxu0 0
        %1690 = vmatpush1.bf16.xpose.msra.mxu0 0
        %1691 = vmatprep.subr.bf16.mxu0 0
        %1692 = vmatpush1.bf16.xpose.msra.mxu0 0
        %1693 = vmatprep.subr.bf16.mxu0 0
        %1694 = vmatpush1.bf16.xpose.msra.mxu0 0
        %1695 = vmatprep.subr.bf16.mxu0 0
        %1696 = vmatpush1.bf16.xpose.msra.mxu0 %v1679
        %1697 = vmatprep.subr.bf16.mxu0 0
        %1698 = vmatpush2.bf16.xpose.msra.mxu0 0
        %1699 = vmatprep.subr.bf16.mxu0 0
        %1700 = vmatpush2.bf16.xpose.msra.mxu0 0
        %1701 = vmatprep.subr.bf16.mxu0 0
        %1702 = vmatpush2.bf16.xpose.msra.mxu0 0
        %1703 = vmatprep.subr.bf16.mxu0 0
        %1704 = vmatpush2.bf16.xpose.msra.mxu0 0
        %1705 = vmatprep.subr.bf16.mxu0 0
        %1706 = vmatpush2.bf16.xpose.msra.mxu0 0
        %1707 = vmatprep.subr.bf16.mxu0 0
        %1708 = vmatpush2.bf16.xpose.msra.mxu0 0
        %1709 = vmatprep.subr.bf16.mxu0 0
        %1710 = vmatpush2.bf16.xpose.msra.mxu0 0
        %1711 = vmatprep.subr.bf16.mxu0 0
        %1712 = vmatpush2.bf16.xpose.msra.mxu0 0
        %1713 = vmatprep.mubr.bf16.mxu0 0
        %1714 = vmatmul.mubr.bf16.gmra.mxu0 %v1676
        %v1715 = vpop.f32.mrf.mxu0
        %v1716 = vadd.f32 0.0, %v1715
        %v1717 = vpop.f32.mrf.mxu0
        %v1718 = vpop.f32.mrf.mxu0
        %v1719 = vadd.f32 0.0, %v1718
        %v1720 = vpop.f32.mrf.mxu0
        %1721 = vdwg.mxu0
        %v1722 = vmul.f32 %v1716, 0.17677669
        %v1723 = vmul.f32 %v1719, 0.17677669
        %v1724 = vsel %vm1181, %v1722, -inf
        %1725 = vmax.xlane.f32.xlu0 %v1724
        %v1726 = vpop.xlane.xlu0 %1725
        %v1727 = vsel %vm1181, %v1723, -inf
        %1728 = vmax.xlane.f32.xlu0 %v1727
        %v1729 = vpop.xlane.xlu0 %1728
        %v1730 = vsub.f32 %v1722, %v1726
        %v1731 = vsub.f32 %v1723, %v1729
        %v1732 = vmul.f32 %v1730, 1.442695
        %v1733 = vpow.pop %v1732
        %v1734 = vmul.f32 %v1731, 1.442695
        %v1735 = vpow.pop %v1734
        %v1736 = vsel %vm1181, %v1733, 0.0
        %1737 = vadd.xlane.f32.xlu0 %v1736
        %v1738 = vpop.xlane.xlu0 %1737
        %v1739 = vsel %vm1181, %v1735, 0.0
        %1740 = vadd.xlane.f32.xlu0 %v1739
        %v1741 = vpop.xlane.xlu0 %1740
        %v1742 = vrcp.pop %v1738
        %v1743 = vrcp.pop %v1741
        %v1744 = vmul.f32 %v1733, %v1742
        %v1745 = vmul.f32 %v1735, %v1743
        %v1746 = vpack.c.bf16 %v1745, %v1744
        %1747 = vrot.lane.b32.xlu0 %v1130, 32
        %v1748 = vpop.permute.xlu0 %1747
        %v1751 = vsel %vm1181, %v1746, 0
        %1753 = vmatprep.subr.bf16.mxu0 0
        %1754 = vmatpush1.bf16.msra.mxu0 0
        %1755 = vmatprep.subr.bf16.mxu0 0
        %1756 = vmatpush1.bf16.msra.mxu0 0
        %1757 = vmatprep.subr.bf16.mxu0 0
        %1758 = vmatpush1.bf16.msra.mxu0 0
        %1759 = vmatprep.subr.bf16.mxu0 0
        %1760 = vmatpush1.bf16.msra.mxu0 0
        %1761 = vmatprep.subr.bf16.mxu0 0
        %1762 = vmatpush1.bf16.msra.mxu0 0
        %1763 = vmatprep.subr.bf16.mxu0 0
        %1764 = vmatpush1.bf16.msra.mxu0 0
        %1765 = vmatprep.subr.bf16.mxu0 0
        %1766 = vmatpush1.bf16.msra.mxu0 0
        %1767 = vmatprep.subr.bf16.mxu0 0
        %1768 = vmatpush1.bf16.msra.mxu0 %v1748
        %1769 = vmatprep.subr.bf16.mxu0 0
        %1770 = vmatpush2.bf16.msra.mxu0 0
        %1771 = vmatprep.subr.bf16.mxu0 0
        %1772 = vmatpush2.bf16.msra.mxu0 0
        %1773 = vmatprep.subr.bf16.mxu0 0
        %1774 = vmatpush2.bf16.msra.mxu0 0
        %1775 = vmatprep.subr.bf16.mxu0 0
        %1776 = vmatpush2.bf16.msra.mxu0 0
        %1777 = vmatprep.subr.bf16.mxu0 0
        %1778 = vmatpush2.bf16.msra.mxu0 0
        %1779 = vmatprep.subr.bf16.mxu0 0
        %1780 = vmatpush2.bf16.msra.mxu0 0
        %1781 = vmatprep.subr.bf16.mxu0 0
        %1782 = vmatpush2.bf16.msra.mxu0 0
        %1783 = vmatprep.subr.bf16.mxu0 0
        %1784 = vmatpush2.bf16.msra.mxu0 0
        %1785 = vmatprep.mubr.bf16.mxu0 0
        %1786 = vmatmul.mubr.bf16.gmra.mxu0 %v1751
        %v1787 = vpop.f32.mrf.mxu0
        %v1788 = vadd.f32 0.0, %v1787
        %v1789 = vpop.f32.mrf.mxu0
        %v1790 = vpop.f32.mrf.mxu0
        %v1791 = vadd.f32 0.0, %v1790
        %v1792 = vpop.f32.mrf.mxu0
        %1793 = vdwg.mxu0
        %v1794 = vpack.c.bf16 %v1791, %v1788
        %v1799 = vunpack.c.l.b16 %v1124
        %v1800 = vunpack.c.l.b16 %v1125
        %v1801 = vunpack.c.l.b16 %v1126
        %v1802 = vunpack.c.l.b16 %v1127
        %v1803 = vpack.c.b16 %v1800, %v1799
        %v1804 = vpack.c.b16 %v1802, %v1801
        %v1808 = vsel %vm1131, %v1794, 0
        %1810 = vmatprep.subr.bf16.mxu0 0
        %1811 = vmatpush1.bf16.msra.mxu0 0
        %1812 = vmatprep.subr.bf16.mxu0 0
        %1813 = vmatpush1.bf16.msra.mxu0 0
        %1814 = vmatprep.subr.bf16.mxu0 0
        %1815 = vmatpush1.bf16.msra.mxu0 0
        %1816 = vmatprep.subr.bf16.mxu0 0
        %1817 = vmatpush1.bf16.msra.mxu0 0
        %1818 = vmatprep.subr.bf16.mxu0 0
        %1819 = vmatpush1.bf16.msra.mxu0 0
        %1820 = vmatprep.subr.bf16.mxu0 0
        %1821 = vmatpush1.bf16.msra.mxu0 0
        %1822 = vmatprep.subr.bf16.mxu0 0
        %1823 = vmatpush1.bf16.msra.mxu0 %v1804
        %1824 = vmatprep.subr.bf16.mxu0 0
        %1825 = vmatpush1.bf16.msra.mxu0 %v1803
        %1826 = vmatprep.subr.bf16.mxu0 0
        %1827 = vmatpush2.bf16.msra.mxu0 0
        %1828 = vmatprep.subr.bf16.mxu0 0
        %1829 = vmatpush2.bf16.msra.mxu0 0
        %1830 = vmatprep.subr.bf16.mxu0 0
        %1831 = vmatpush2.bf16.msra.mxu0 0
        %1832 = vmatprep.subr.bf16.mxu0 0
        %1833 = vmatpush2.bf16.msra.mxu0 0
        %1834 = vmatprep.subr.bf16.mxu0 0
        %1835 = vmatpush2.bf16.msra.mxu0 0
        %1836 = vmatprep.subr.bf16.mxu0 0
        %1837 = vmatpush2.bf16.msra.mxu0 0
        %1838 = vmatprep.subr.bf16.mxu0 0
        %1839 = vmatpush2.bf16.msra.mxu0 0
        %1840 = vmatprep.subr.bf16.mxu0 0
        %1841 = vmatpush2.bf16.msra.mxu0 0
        %1842 = vmatprep.mubr.bf16.mxu0 0
        %1843 = vmatmul.mubr.bf16.gmra.mxu0 %v1808
        %v1844 = vpop.f32.mrf.mxu0
        %v1845 = vadd.f32 0.0, %v1844
        %v1846 = vpop.f32.mrf.mxu0
        %v1847 = vpop.f32.mrf.mxu0
        %v1848 = vadd.f32 0.0, %v1847
        %v1849 = vpop.f32.mrf.mxu0
        %1850 = vdwg.mxu0
        %v1851 = vadd.f32 %v1669, %v1845
        %v1852 = vadd.f32 %v1670, %v1848
        %v1853 = vld [vmem:[%s832] sm:$0x1]
        %v1855 = vlaneseq
        %v1856 = vshrl.u32 %v1855, 7
        %v1857 = vsub.s32 0, %v1856
        %v1858 = vrot.slane %v1853, %v1857
        %v1860 = vadd.f32 %v1851, %v1858
        %v1861 = vadd.f32 %v1852, %v1858
        %v1862 = vadd.f32 %v848, %v1860
        %v1863 = vadd.f32 %v849, %v1861
        %1864 = vadd.xlane.f32.xlu0 %v1862
        %v1865 = vpop.xlane.xlu0 %1864
        %1866 = vadd.xlane.f32.xlu0 %v1863
        %v1867 = vpop.xlane.xlu0 %1866
        %v1868 = vrcp.pop 128.0
        %v1869 = vmul.f32 %v1865, %v1868
        %v1870 = vmul.f32 %v1867, %v1868
        %v1871 = vsub.f32 %v1862, %v1869
        %v1872 = vsub.f32 %v1863, %v1870
        %v1873 = vmul.f32 %v1871, %v1871
        %v1874 = vmul.f32 %v1872, %v1872
        %1875 = vadd.xlane.f32.xlu0 %v1873
        %v1876 = vpop.xlane.xlu0 %1875
        %1877 = vadd.xlane.f32.xlu0 %v1874
        %v1878 = vpop.xlane.xlu0 %1877
        %v1879 = vmul.f32 %v1876, %v1868
        %v1880 = vmul.f32 %v1878, %v1868
        %v1881 = vadd.f32 %v1879, 1e-05
        %v1882 = vadd.f32 %v1880, 1e-05
        %v1883 = vrsqrt.pop %v1881
        %v1884 = vrsqrt.pop %v1882
        %v1885 = vmul.f32 %v1871, %v1883
        %v1886 = vmul.f32 %v1872, %v1884
        %v1887 = vld [vmem:[%s693] sm:$0x1]
        %v1889 = vlaneseq
        %v1890 = vshrl.u32 %v1889, 7
        %v1891 = vsub.s32 0, %v1890
        %v1892 = vrot.slane %v1887, %v1891
        %v1894 = vmul.f32 %v1885, %v1892
        %v1895 = vmul.f32 %v1886, %v1892
        %v1896 = vld [vmem:[%s701] sm:$0x1]
        %v1898 = vlaneseq
        %v1899 = vshrl.u32 %v1898, 7
        %v1900 = vsub.s32 0, %v1899
        %v1901 = vrot.slane %v1896, %v1900
        %v1903 = vadd.f32 %v1894, %v1901
        %v1904 = vadd.f32 %v1895, %v1901
        %v1905 = vpack.c.bf16 %v1904, %v1903
        %v1906 = vld [vmem:[%s710] sm:$0xff]
        %v1907 = vld [vmem:[%s710 + $0x8] sm:$0xff]
        %v1908 = vld [vmem:[%s710 + $0x10] sm:$0xff]
        %v1909 = vld [vmem:[%s710 + $0x18] sm:$0xff]
        %v1910 = vld [vmem:[%s710 + $0x20] sm:$0xff]
        %v1911 = vld [vmem:[%s710 + $0x28] sm:$0xff]
        %v1912 = vld [vmem:[%s710 + $0x30] sm:$0xff]
        %v1913 = vld [vmem:[%s710 + $0x38] sm:$0xff]
        %v1914 = vld [vmem:[%s710 + $0x40] sm:$0xff]
        %v1915 = vld [vmem:[%s710 + $0x48] sm:$0xff]
        %v1916 = vld [vmem:[%s710 + $0x50] sm:$0xff]
        %v1917 = vld [vmem:[%s710 + $0x58] sm:$0xff]
        %v1918 = vld [vmem:[%s710 + $0x60] sm:$0xff]
        %v1919 = vld [vmem:[%s710 + $0x68] sm:$0xff]
        %v1920 = vld [vmem:[%s710 + $0x70] sm:$0xff]
        %v1921 = vld [vmem:[%s710 + $0x78] sm:$0xff]
        %v1922 = vld [vmem:[%s710 + $0x80] sm:$0xff]
        %v1923 = vld [vmem:[%s710 + $0x88] sm:$0xff]
        %v1924 = vld [vmem:[%s710 + $0x90] sm:$0xff]
        %v1925 = vld [vmem:[%s710 + $0x98] sm:$0xff]
        %v1926 = vld [vmem:[%s710 + $0xa0] sm:$0xff]
        %v1927 = vld [vmem:[%s710 + $0xa8] sm:$0xff]
        %v1928 = vld [vmem:[%s710 + $0xb0] sm:$0xff]
        %v1929 = vld [vmem:[%s710 + $0xb8] sm:$0xff]
        %v1930 = vld [vmem:[%s710 + $0xc0] sm:$0xff]
        %v1931 = vld [vmem:[%s710 + $0xc8] sm:$0xff]
        %v1932 = vld [vmem:[%s710 + $0xd0] sm:$0xff]
        %v1933 = vld [vmem:[%s710 + $0xd8] sm:$0xff]
        %v1934 = vld [vmem:[%s710 + $0xe0] sm:$0xff]
        %v1935 = vld [vmem:[%s710 + $0xe8] sm:$0xff]
        %v1936 = vld [vmem:[%s710 + $0xf0] sm:$0xff]
        %v1937 = vld [vmem:[%s710 + $0xf8] sm:$0xff]
        %v1938 = vld [vmem:[%s719] sm:$0xf]
        %v1940 = vlaneseq
        %v1941 = vshrl.u32 %v1940, 7
        %v1942 = vsub.s32 0, %v1941
        %v1943 = vrot.slane %v1938, %v1942
        %v1944 = vlaneseq
        %v1945 = vshrl.u32 %v1944, 7
        %v1946 = vsub.s32 1, %v1945
        %v1947 = vrot.slane %v1938, %v1946
        %v1948 = vlaneseq
        %v1949 = vshrl.u32 %v1948, 7
        %v1950 = vsub.s32 2, %v1949
        %v1951 = vrot.slane %v1938, %v1950
        %v1952 = vlaneseq
        %v1953 = vshrl.u32 %v1952, 7
        %v1954 = vsub.s32 3, %v1953
        %v1955 = vrot.slane %v1938, %v1954
        %v1992 = vunpack.c.l.b16 %v1906
        %v1993 = vunpack.c.h.b16 %v1906
        %v1994 = vunpack.c.l.b16 %v1907
        %v1995 = vunpack.c.h.b16 %v1907
        %v1996 = vunpack.c.l.b16 %v1908
        %v1997 = vunpack.c.h.b16 %v1908
        %v1998 = vunpack.c.l.b16 %v1909
        %v1999 = vunpack.c.h.b16 %v1909
        %v2000 = vunpack.c.l.b16 %v1910
        %v2001 = vunpack.c.h.b16 %v1910
        %v2002 = vunpack.c.l.b16 %v1911
        %v2003 = vunpack.c.h.b16 %v1911
        %v2004 = vunpack.c.l.b16 %v1912
        %v2005 = vunpack.c.h.b16 %v1912
        %v2006 = vunpack.c.l.b16 %v1913
        %v2007 = vunpack.c.h.b16 %v1913
        %v2008 = vunpack.c.l.b16 %v1914
        %v2009 = vunpack.c.h.b16 %v1914
        %v2010 = vunpack.c.l.b16 %v1915
        %v2011 = vunpack.c.h.b16 %v1915
        %v2012 = vunpack.c.l.b16 %v1916
        %v2013 = vunpack.c.h.b16 %v1916
        %v2014 = vunpack.c.l.b16 %v1917
        %v2015 = vunpack.c.h.b16 %v1917
        %v2016 = vunpack.c.l.b16 %v1918
        %v2017 = vunpack.c.h.b16 %v1918
        %v2018 = vunpack.c.l.b16 %v1919
        %v2019 = vunpack.c.h.b16 %v1919
        %v2020 = vunpack.c.l.b16 %v1920
        %v2021 = vunpack.c.h.b16 %v1920
        %v2022 = vunpack.c.l.b16 %v1921
        %v2023 = vunpack.c.h.b16 %v1921
        %v2024 = vunpack.c.l.b16 %v1922
        %v2025 = vunpack.c.h.b16 %v1922
        %v2026 = vunpack.c.l.b16 %v1923
        %v2027 = vunpack.c.h.b16 %v1923
        %v2028 = vunpack.c.l.b16 %v1924
        %v2029 = vunpack.c.h.b16 %v1924
        %v2030 = vunpack.c.l.b16 %v1925
        %v2031 = vunpack.c.h.b16 %v1925
        %v2032 = vunpack.c.l.b16 %v1926
        %v2033 = vunpack.c.h.b16 %v1926
        %v2034 = vunpack.c.l.b16 %v1927
        %v2035 = vunpack.c.h.b16 %v1927
        %v2036 = vunpack.c.l.b16 %v1928
        %v2037 = vunpack.c.h.b16 %v1928
        %v2038 = vunpack.c.l.b16 %v1929
        %v2039 = vunpack.c.h.b16 %v1929
        %v2040 = vunpack.c.l.b16 %v1930
        %v2041 = vunpack.c.h.b16 %v1930
        %v2042 = vunpack.c.l.b16 %v1931
        %v2043 = vunpack.c.h.b16 %v1931
        %v2044 = vunpack.c.l.b16 %v1932
        %v2045 = vunpack.c.h.b16 %v1932
        %v2046 = vunpack.c.l.b16 %v1933
        %v2047 = vunpack.c.h.b16 %v1933
        %v2048 = vunpack.c.l.b16 %v1934
        %v2049 = vunpack.c.h.b16 %v1934
        %v2050 = vunpack.c.l.b16 %v1935
        %v2051 = vunpack.c.h.b16 %v1935
        %v2052 = vunpack.c.l.b16 %v1936
        %v2053 = vunpack.c.h.b16 %v1936
        %v2054 = vunpack.c.l.b16 %v1937
        %v2055 = vunpack.c.h.b16 %v1937
        %v2056 = vpack.c.b16 %v1996, %v1992
        %v2057 = vpack.c.b16 %v1997, %v1993
        %v2058 = vpack.c.b16 %v1998, %v1994
        %v2059 = vpack.c.b16 %v1999, %v1995
        %v2060 = vpack.c.b16 %v2004, %v2000
        %v2061 = vpack.c.b16 %v2005, %v2001
        %v2062 = vpack.c.b16 %v2006, %v2002
        %v2063 = vpack.c.b16 %v2007, %v2003
        %v2064 = vpack.c.b16 %v2012, %v2008
        %v2065 = vpack.c.b16 %v2013, %v2009
        %v2066 = vpack.c.b16 %v2014, %v2010
        %v2067 = vpack.c.b16 %v2015, %v2011
        %v2068 = vpack.c.b16 %v2020, %v2016
        %v2069 = vpack.c.b16 %v2021, %v2017
        %v2070 = vpack.c.b16 %v2022, %v2018
        %v2071 = vpack.c.b16 %v2023, %v2019
        %v2072 = vpack.c.b16 %v2028, %v2024
        %v2073 = vpack.c.b16 %v2029, %v2025
        %v2074 = vpack.c.b16 %v2030, %v2026
        %v2075 = vpack.c.b16 %v2031, %v2027
        %v2076 = vpack.c.b16 %v2036, %v2032
        %v2077 = vpack.c.b16 %v2037, %v2033
        %v2078 = vpack.c.b16 %v2038, %v2034
        %v2079 = vpack.c.b16 %v2039, %v2035
        %v2080 = vpack.c.b16 %v2044, %v2040
        %v2081 = vpack.c.b16 %v2045, %v2041
        %v2082 = vpack.c.b16 %v2046, %v2042
        %v2083 = vpack.c.b16 %v2047, %v2043
        %v2084 = vpack.c.b16 %v2052, %v2048
        %v2085 = vpack.c.b16 %v2053, %v2049
        %v2086 = vpack.c.b16 %v2054, %v2050
        %v2087 = vpack.c.b16 %v2055, %v2051
        %2120 = vmatprep.subr.bf16.mxu0 %v2085
        %2121 = vmatpush1.bf16.msra.mxu0 %v2084
        %2122 = vmatprep.subr.bf16.mxu0 %v2081
        %2123 = vmatpush1.bf16.msra.mxu0 %v2080
        %2124 = vmatprep.subr.bf16.mxu0 %v2077
        %2125 = vmatpush1.bf16.msra.mxu0 %v2076
        %2126 = vmatprep.subr.bf16.mxu0 %v2073
        %2127 = vmatpush1.bf16.msra.mxu0 %v2072
        %2128 = vmatprep.subr.bf16.mxu0 %v2069
        %2129 = vmatpush1.bf16.msra.mxu0 %v2068
        %2130 = vmatprep.subr.bf16.mxu0 %v2065
        %2131 = vmatpush1.bf16.msra.mxu0 %v2064
        %2132 = vmatprep.subr.bf16.mxu0 %v2061
        %2133 = vmatpush1.bf16.msra.mxu0 %v2060
        %2134 = vmatprep.subr.bf16.mxu0 %v2057
        %2135 = vmatpush1.bf16.msra.mxu0 %v2056
        %2136 = vmatprep.subr.bf16.mxu0 0
        %2137 = vmatpush2.bf16.msra.mxu0 0
        %2138 = vmatprep.subr.bf16.mxu0 0
        %2139 = vmatpush2.bf16.msra.mxu0 0
        %2140 = vmatprep.subr.bf16.mxu0 0
        %2141 = vmatpush2.bf16.msra.mxu0 0
        %2142 = vmatprep.subr.bf16.mxu0 0
        %2143 = vmatpush2.bf16.msra.mxu0 0
        %2144 = vmatprep.subr.bf16.mxu0 0
        %2145 = vmatpush2.bf16.msra.mxu0 0
        %2146 = vmatprep.subr.bf16.mxu0 0
        %2147 = vmatpush2.bf16.msra.mxu0 0
        %2148 = vmatprep.subr.bf16.mxu0 0
        %2149 = vmatpush2.bf16.msra.mxu0 0
        %2150 = vmatprep.subr.bf16.mxu0 0
        %2151 = vmatpush2.bf16.msra.mxu0 0
        %2152 = vmatprep.mubr.bf16.mxu0 0
        %2153 = vmatmul.mubr.bf16.gmra.mxu0 %v1905
        %v2154 = vpop.f32.mrf.mxu0
        %v2155 = vadd.f32 %v1943, %v2154
        %v2156 = vpop.f32.mrf.mxu0
        %v2157 = vadd.f32 %v1947, %v2156
        %v2158 = vpop.f32.mrf.mxu0
        %v2159 = vadd.f32 %v1943, %v2158
        %v2160 = vpop.f32.mrf.mxu0
        %v2161 = vadd.f32 %v1947, %v2160
        %2162 = vdwg.mxu0
        %2163 = vmatprep.subr.bf16.mxu0 %v2087
        %2164 = vmatpush1.bf16.msra.mxu0 %v2086
        %2165 = vmatprep.subr.bf16.mxu0 %v2083
        %2166 = vmatpush1.bf16.msra.mxu0 %v2082
        %2167 = vmatprep.subr.bf16.mxu0 %v2079
        %2168 = vmatpush1.bf16.msra.mxu0 %v2078
        %2169 = vmatprep.subr.bf16.mxu0 %v2075
        %2170 = vmatpush1.bf16.msra.mxu0 %v2074
        %2171 = vmatprep.subr.bf16.mxu0 %v2071
        %2172 = vmatpush1.bf16.msra.mxu0 %v2070
        %2173 = vmatprep.subr.bf16.mxu0 %v2067
        %2174 = vmatpush1.bf16.msra.mxu0 %v2066
        %2175 = vmatprep.subr.bf16.mxu0 %v2063
        %2176 = vmatpush1.bf16.msra.mxu0 %v2062
        %2177 = vmatprep.subr.bf16.mxu0 %v2059
        %2178 = vmatpush1.bf16.msra.mxu0 %v2058
        %2179 = vmatprep.subr.bf16.mxu0 0
        %2180 = vmatpush2.bf16.msra.mxu0 0
        %2181 = vmatprep.subr.bf16.mxu0 0
        %2182 = vmatpush2.bf16.msra.mxu0 0
        %2183 = vmatprep.subr.bf16.mxu0 0
        %2184 = vmatpush2.bf16.msra.mxu0 0
        %2185 = vmatprep.subr.bf16.mxu0 0
        %2186 = vmatpush2.bf16.msra.mxu0 0
        %2187 = vmatprep.subr.bf16.mxu0 0
        %2188 = vmatpush2.bf16.msra.mxu0 0
        %2189 = vmatprep.subr.bf16.mxu0 0
        %2190 = vmatpush2.bf16.msra.mxu0 0
        %2191 = vmatprep.subr.bf16.mxu0 0
        %2192 = vmatpush2.bf16.msra.mxu0 0
        %2193 = vmatprep.subr.bf16.mxu0 0
        %2194 = vmatpush2.bf16.msra.mxu0 0
        %2195 = vmatprep.mubr.bf16.mxu0 0
        %2196 = vmatmul.mubr.bf16.gmra.mxu0 %v1905
        %v2197 = vpop.f32.mrf.mxu0
        %v2198 = vadd.f32 %v1951, %v2197
        %v2199 = vpop.f32.mrf.mxu0
        %v2200 = vadd.f32 %v1955, %v2199
        %v2201 = vpop.f32.mrf.mxu0
        %v2202 = vadd.f32 %v1951, %v2201
        %v2203 = vpop.f32.mrf.mxu0
        %v2204 = vadd.f32 %v1955, %v2203
        %2205 = vdwg.mxu0
        %v2206 = vmax.f32 %v2155, 0.0
        %v2207 = vmax.f32 %v2157, 0.0
        %v2208 = vmax.f32 %v2198, 0.0
        %v2209 = vmax.f32 %v2200, 0.0
        %v2210 = vmax.f32 %v2159, 0.0
        %v2211 = vmax.f32 %v2161, 0.0
        %v2212 = vmax.f32 %v2202, 0.0
        %v2213 = vmax.f32 %v2204, 0.0
        %v2214 = vpack.c.bf16 %v2210, %v2206
        %v2215 = vpack.c.bf16 %v2211, %v2207
        %v2216 = vpack.c.bf16 %v2212, %v2208
        %v2217 = vpack.c.bf16 %v2213, %v2209
        %v2218 = vld [vmem:[%s728] sm:$0xf]
        %v2219 = vld [vmem:[%s728 + $0x4] sm:$0xf]
        %v2220 = vld [vmem:[%s728 + $0x8] sm:$0xf]
        %v2221 = vld [vmem:[%s728 + $0xc] sm:$0xf]
        %v2222 = vld [vmem:[%s728 + $0x10] sm:$0xf]
        %v2223 = vld [vmem:[%s728 + $0x14] sm:$0xf]
        %v2224 = vld [vmem:[%s728 + $0x18] sm:$0xf]
        %v2225 = vld [vmem:[%s728 + $0x1c] sm:$0xf]
        %v2226 = vld [vmem:[%s728 + $0x20] sm:$0xf]
        %v2227 = vld [vmem:[%s728 + $0x24] sm:$0xf]
        %v2228 = vld [vmem:[%s728 + $0x28] sm:$0xf]
        %v2229 = vld [vmem:[%s728 + $0x2c] sm:$0xf]
        %v2230 = vld [vmem:[%s728 + $0x30] sm:$0xf]
        %v2231 = vld [vmem:[%s728 + $0x34] sm:$0xf]
        %v2232 = vld [vmem:[%s728 + $0x38] sm:$0xf]
        %v2233 = vld [vmem:[%s728 + $0x3c] sm:$0xf]
        %v2234 = vld [vmem:[%s728 + $0x40] sm:$0xf]
        %v2235 = vld [vmem:[%s728 + $0x44] sm:$0xf]
        %v2236 = vld [vmem:[%s728 + $0x48] sm:$0xf]
        %v2237 = vld [vmem:[%s728 + $0x4c] sm:$0xf]
        %v2238 = vld [vmem:[%s728 + $0x50] sm:$0xf]
        %v2239 = vld [vmem:[%s728 + $0x54] sm:$0xf]
        %v2240 = vld [vmem:[%s728 + $0x58] sm:$0xf]
        %v2241 = vld [vmem:[%s728 + $0x5c] sm:$0xf]
        %v2242 = vld [vmem:[%s728 + $0x60] sm:$0xf]
        %v2243 = vld [vmem:[%s728 + $0x64] sm:$0xf]
        %v2244 = vld [vmem:[%s728 + $0x68] sm:$0xf]
        %v2245 = vld [vmem:[%s728 + $0x6c] sm:$0xf]
        %v2246 = vld [vmem:[%s728 + $0x70] sm:$0xf]
        %v2247 = vld [vmem:[%s728 + $0x74] sm:$0xf]
        %v2248 = vld [vmem:[%s728 + $0x78] sm:$0xf]
        %v2249 = vld [vmem:[%s728 + $0x7c] sm:$0xf]
        %v2250 = vld [vmem:[%s728 + $0x80] sm:$0xf]
        %v2251 = vld [vmem:[%s728 + $0x84] sm:$0xf]
        %v2252 = vld [vmem:[%s728 + $0x88] sm:$0xf]
        %v2253 = vld [vmem:[%s728 + $0x8c] sm:$0xf]
        %v2254 = vld [vmem:[%s728 + $0x90] sm:$0xf]
        %v2255 = vld [vmem:[%s728 + $0x94] sm:$0xf]
        %v2256 = vld [vmem:[%s728 + $0x98] sm:$0xf]
        %v2257 = vld [vmem:[%s728 + $0x9c] sm:$0xf]
        %v2258 = vld [vmem:[%s728 + $0xa0] sm:$0xf]
        %v2259 = vld [vmem:[%s728 + $0xa4] sm:$0xf]
        %v2260 = vld [vmem:[%s728 + $0xa8] sm:$0xf]
        %v2261 = vld [vmem:[%s728 + $0xac] sm:$0xf]
        %v2262 = vld [vmem:[%s728 + $0xb0] sm:$0xf]
        %v2263 = vld [vmem:[%s728 + $0xb4] sm:$0xf]
        %v2264 = vld [vmem:[%s728 + $0xb8] sm:$0xf]
        %v2265 = vld [vmem:[%s728 + $0xbc] sm:$0xf]
        %v2266 = vld [vmem:[%s728 + $0xc0] sm:$0xf]
        %v2267 = vld [vmem:[%s728 + $0xc4] sm:$0xf]
        %v2268 = vld [vmem:[%s728 + $0xc8] sm:$0xf]
        %v2269 = vld [vmem:[%s728 + $0xcc] sm:$0xf]
        %v2270 = vld [vmem:[%s728 + $0xd0] sm:$0xf]
        %v2271 = vld [vmem:[%s728 + $0xd4] sm:$0xf]
        %v2272 = vld [vmem:[%s728 + $0xd8] sm:$0xf]
        %v2273 = vld [vmem:[%s728 + $0xdc] sm:$0xf]
        %v2274 = vld [vmem:[%s728 + $0xe0] sm:$0xf]
        %v2275 = vld [vmem:[%s728 + $0xe4] sm:$0xf]
        %v2276 = vld [vmem:[%s728 + $0xe8] sm:$0xf]
        %v2277 = vld [vmem:[%s728 + $0xec] sm:$0xf]
        %v2278 = vld [vmem:[%s728 + $0xf0] sm:$0xf]
        %v2279 = vld [vmem:[%s728 + $0xf4] sm:$0xf]
        %v2280 = vld [vmem:[%s728 + $0xf8] sm:$0xf]
        %v2281 = vld [vmem:[%s728 + $0xfc] sm:$0xf]
        %v2282 = vld [vmem:[%s835] sm:$0x1]
        %v2284 = vlaneseq
        %v2285 = vshrl.u32 %v2284, 7
        %v2286 = vsub.s32 0, %v2285
        %v2287 = vrot.slane %v2282, %v2286
        %v2353 = vunpack.c.l.b16 %v2218
        %v2354 = vunpack.c.l.b16 %v2219
        %v2355 = vunpack.c.l.b16 %v2220
        %v2356 = vunpack.c.l.b16 %v2221
        %v2357 = vunpack.c.l.b16 %v2222
        %v2358 = vunpack.c.l.b16 %v2223
        %v2359 = vunpack.c.l.b16 %v2224
        %v2360 = vunpack.c.l.b16 %v2225
        %v2361 = vunpack.c.l.b16 %v2226
        %v2362 = vunpack.c.l.b16 %v2227
        %v2363 = vunpack.c.l.b16 %v2228
        %v2364 = vunpack.c.l.b16 %v2229
        %v2365 = vunpack.c.l.b16 %v2230
        %v2366 = vunpack.c.l.b16 %v2231
        %v2367 = vunpack.c.l.b16 %v2232
        %v2368 = vunpack.c.l.b16 %v2233
        %v2369 = vunpack.c.l.b16 %v2234
        %v2370 = vunpack.c.l.b16 %v2235
        %v2371 = vunpack.c.l.b16 %v2236
        %v2372 = vunpack.c.l.b16 %v2237
        %v2373 = vunpack.c.l.b16 %v2238
        %v2374 = vunpack.c.l.b16 %v2239
        %v2375 = vunpack.c.l.b16 %v2240
        %v2376 = vunpack.c.l.b16 %v2241
        %v2377 = vunpack.c.l.b16 %v2242
        %v2378 = vunpack.c.l.b16 %v2243
        %v2379 = vunpack.c.l.b16 %v2244
        %v2380 = vunpack.c.l.b16 %v2245
        %v2381 = vunpack.c.l.b16 %v2246
        %v2382 = vunpack.c.l.b16 %v2247
        %v2383 = vunpack.c.l.b16 %v2248
        %v2384 = vunpack.c.l.b16 %v2249
        %v2385 = vunpack.c.l.b16 %v2250
        %v2386 = vunpack.c.l.b16 %v2251
        %v2387 = vunpack.c.l.b16 %v2252
        %v2388 = vunpack.c.l.b16 %v2253
        %v2389 = vunpack.c.l.b16 %v2254
        %v2390 = vunpack.c.l.b16 %v2255
        %v2391 = vunpack.c.l.b16 %v2256
        %v2392 = vunpack.c.l.b16 %v2257
        %v2393 = vunpack.c.l.b16 %v2258
        %v2394 = vunpack.c.l.b16 %v2259
        %v2395 = vunpack.c.l.b16 %v2260
        %v2396 = vunpack.c.l.b16 %v2261
        %v2397 = vunpack.c.l.b16 %v2262
        %v2398 = vunpack.c.l.b16 %v2263
        %v2399 = vunpack.c.l.b16 %v2264
        %v2400 = vunpack.c.l.b16 %v2265
        %v2401 = vunpack.c.l.b16 %v2266
        %v2402 = vunpack.c.l.b16 %v2267
        %v2403 = vunpack.c.l.b16 %v2268
        %v2404 = vunpack.c.l.b16 %v2269
        %v2405 = vunpack.c.l.b16 %v2270
        %v2406 = vunpack.c.l.b16 %v2271
        %v2407 = vunpack.c.l.b16 %v2272
        %v2408 = vunpack.c.l.b16 %v2273
        %v2409 = vunpack.c.l.b16 %v2274
        %v2410 = vunpack.c.l.b16 %v2275
        %v2411 = vunpack.c.l.b16 %v2276
        %v2412 = vunpack.c.l.b16 %v2277
        %v2413 = vunpack.c.l.b16 %v2278
        %v2414 = vunpack.c.l.b16 %v2279
        %v2415 = vunpack.c.l.b16 %v2280
        %v2416 = vunpack.c.l.b16 %v2281
        %v2417 = vpack.c.b16 %v2354, %v2353
        %v2418 = vpack.c.b16 %v2356, %v2355
        %v2419 = vpack.c.b16 %v2358, %v2357
        %v2420 = vpack.c.b16 %v2360, %v2359
        %v2421 = vpack.c.b16 %v2362, %v2361
        %v2422 = vpack.c.b16 %v2364, %v2363
        %v2423 = vpack.c.b16 %v2366, %v2365
        %v2424 = vpack.c.b16 %v2368, %v2367
        %v2425 = vpack.c.b16 %v2370, %v2369
        %v2426 = vpack.c.b16 %v2372, %v2371
        %v2427 = vpack.c.b16 %v2374, %v2373
        %v2428 = vpack.c.b16 %v2376, %v2375
        %v2429 = vpack.c.b16 %v2378, %v2377
        %v2430 = vpack.c.b16 %v2380, %v2379
        %v2431 = vpack.c.b16 %v2382, %v2381
        %v2432 = vpack.c.b16 %v2384, %v2383
        %v2433 = vpack.c.b16 %v2386, %v2385
        %v2434 = vpack.c.b16 %v2388, %v2387
        %v2435 = vpack.c.b16 %v2390, %v2389
        %v2436 = vpack.c.b16 %v2392, %v2391
        %v2437 = vpack.c.b16 %v2394, %v2393
        %v2438 = vpack.c.b16 %v2396, %v2395
        %v2439 = vpack.c.b16 %v2398, %v2397
        %v2440 = vpack.c.b16 %v2400, %v2399
        %v2441 = vpack.c.b16 %v2402, %v2401
        %v2442 = vpack.c.b16 %v2404, %v2403
        %v2443 = vpack.c.b16 %v2406, %v2405
        %v2444 = vpack.c.b16 %v2408, %v2407
        %v2445 = vpack.c.b16 %v2410, %v2409
        %v2446 = vpack.c.b16 %v2412, %v2411
        %v2447 = vpack.c.b16 %v2414, %v2413
        %v2448 = vpack.c.b16 %v2416, %v2415
        %2481 = vmatprep.subr.bf16.mxu0 0
        %2482 = vmatpush1.bf16.msra.mxu0 %v2424
        %2483 = vmatprep.subr.bf16.mxu0 0
        %2484 = vmatpush1.bf16.msra.mxu0 %v2423
        %2485 = vmatprep.subr.bf16.mxu0 0
        %2486 = vmatpush1.bf16.msra.mxu0 %v2422
        %2487 = vmatprep.subr.bf16.mxu0 0
        %2488 = vmatpush1.bf16.msra.mxu0 %v2421
        %2489 = vmatprep.subr.bf16.mxu0 0
        %2490 = vmatpush1.bf16.msra.mxu0 %v2420
        %2491 = vmatprep.subr.bf16.mxu0 0
        %2492 = vmatpush1.bf16.msra.mxu0 %v2419
        %2493 = vmatprep.subr.bf16.mxu0 0
        %2494 = vmatpush1.bf16.msra.mxu0 %v2418
        %2495 = vmatprep.subr.bf16.mxu0 0
        %2496 = vmatpush1.bf16.msra.mxu0 %v2417
        %2497 = vmatprep.subr.bf16.mxu0 0
        %2498 = vmatpush2.bf16.msra.mxu0 %v2432
        %2499 = vmatprep.subr.bf16.mxu0 0
        %2500 = vmatpush2.bf16.msra.mxu0 %v2431
        %2501 = vmatprep.subr.bf16.mxu0 0
        %2502 = vmatpush2.bf16.msra.mxu0 %v2430
        %2503 = vmatprep.subr.bf16.mxu0 0
        %2504 = vmatpush2.bf16.msra.mxu0 %v2429
        %2505 = vmatprep.subr.bf16.mxu0 0
        %2506 = vmatpush2.bf16.msra.mxu0 %v2428
        %2507 = vmatprep.subr.bf16.mxu0 0
        %2508 = vmatpush2.bf16.msra.mxu0 %v2427
        %2509 = vmatprep.subr.bf16.mxu0 0
        %2510 = vmatpush2.bf16.msra.mxu0 %v2426
        %2511 = vmatprep.subr.bf16.mxu0 0
        %2512 = vmatpush2.bf16.msra.mxu0 %v2425
        %2513 = vmatprep.mubr.bf16.mxu0 %v2215
        %2514 = vmatmul.mubr.bf16.gmra.mxu0 %v2214
        %v2515 = vpop.f32.mrf.mxu0
        %v2516 = vadd.f32 %v2287, %v2515
        %v2517 = vpop.f32.mrf.mxu0
        %v2518 = vpop.f32.mrf.mxu0
        %v2519 = vadd.f32 %v2287, %v2518
        %v2520 = vpop.f32.mrf.mxu0
        %2521 = vdwg.mxu0
        %2522 = vmatprep.subr.bf16.mxu0 0
        %2523 = vmatpush1.bf16.msra.mxu0 %v2440
        %2524 = vmatprep.subr.bf16.mxu0 0
        %2525 = vmatpush1.bf16.msra.mxu0 %v2439
        %2526 = vmatprep.subr.bf16.mxu0 0
        %2527 = vmatpush1.bf16.msra.mxu0 %v2438
        %2528 = vmatprep.subr.bf16.mxu0 0
        %2529 = vmatpush1.bf16.msra.mxu0 %v2437
        %2530 = vmatprep.subr.bf16.mxu0 0
        %2531 = vmatpush1.bf16.msra.mxu0 %v2436
        %2532 = vmatprep.subr.bf16.mxu0 0
        %2533 = vmatpush1.bf16.msra.mxu0 %v2435
        %2534 = vmatprep.subr.bf16.mxu0 0
        %2535 = vmatpush1.bf16.msra.mxu0 %v2434
        %2536 = vmatprep.subr.bf16.mxu0 0
        %2537 = vmatpush1.bf16.msra.mxu0 %v2433
        %2538 = vmatprep.subr.bf16.mxu0 0
        %2539 = vmatpush2.bf16.msra.mxu0 %v2448
        %2540 = vmatprep.subr.bf16.mxu0 0
        %2541 = vmatpush2.bf16.msra.mxu0 %v2447
        %2542 = vmatprep.subr.bf16.mxu0 0
        %2543 = vmatpush2.bf16.msra.mxu0 %v2446
        %2544 = vmatprep.subr.bf16.mxu0 0
        %2545 = vmatpush2.bf16.msra.mxu0 %v2445
        %2546 = vmatprep.subr.bf16.mxu0 0
        %2547 = vmatpush2.bf16.msra.mxu0 %v2444
        %2548 = vmatprep.subr.bf16.mxu0 0
        %2549 = vmatpush2.bf16.msra.mxu0 %v2443
        %2550 = vmatprep.subr.bf16.mxu0 0
        %2551 = vmatpush2.bf16.msra.mxu0 %v2442
        %2552 = vmatprep.subr.bf16.mxu0 0
        %2553 = vmatpush2.bf16.msra.mxu0 %v2441
        %2554 = vmatprep.mubr.bf16.mxu0 %v2217
        %2555 = vmatmul.mubr.bf16.gmra.mxu0 %v2216
        %v2556 = vpop.f32.mrf.mxu0
        %v2557 = vadd.f32 %v2516, %v2556
        %v2558 = vpop.f32.mrf.mxu0
        %v2559 = vpop.f32.mrf.mxu0
        %v2560 = vadd.f32 %v2519, %v2559
        %v2561 = vpop.f32.mrf.mxu0
        %2562 = vdwg.mxu0
        %v2563 = vadd.f32 %v1903, %v2557
        %v2564 = vadd.f32 %v1904, %v2560
        %2565 = vadd.xlane.f32.xlu0 %v2563
        %v2566 = vpop.xlane.xlu0 %2565
        %2567 = vadd.xlane.f32.xlu0 %v2564
        %v2568 = vpop.xlane.xlu0 %2567
        %v2569 = vmul.f32 %v2566, %v1868
        %v2570 = vmul.f32 %v2568, %v1868
        %v2571 = vsub.f32 %v2563, %v2569
        %v2572 = vsub.f32 %v2564, %v2570
        %v2573 = vmul.f32 %v2571, %v2571
        %v2574 = vmul.f32 %v2572, %v2572
        %2575 = vadd.xlane.f32.xlu0 %v2573
        %v2576 = vpop.xlane.xlu0 %2575
        %2577 = vadd.xlane.f32.xlu0 %v2574
        %v2578 = vpop.xlane.xlu0 %2577
        %v2579 = vmul.f32 %v2576, %v1868
        %v2580 = vmul.f32 %v2578, %v1868
        %v2581 = vadd.f32 %v2579, 1e-05
        %v2582 = vadd.f32 %v2580, 1e-05
        %v2583 = vrsqrt.pop %v2581
        %v2584 = vrsqrt.pop %v2582
        %v2585 = vmul.f32 %v2571, %v2583
        %v2586 = vmul.f32 %v2572, %v2584
        %v2587 = vld [vmem:[%s838] sm:$0x1]
        %v2589 = vlaneseq
        %v2590 = vshrl.u32 %v2589, 7
        %v2591 = vsub.s32 0, %v2590
        %v2592 = vrot.slane %v2587, %v2591
        %v2594 = vmul.f32 %v2585, %v2592
        %v2595 = vmul.f32 %v2586, %v2592
        %v2596 = vld [vmem:[%s736] sm:$0x1]
        %v2598 = vlaneseq
        %v2599 = vshrl.u32 %v2598, 7
        %v2600 = vsub.s32 0, %v2599
        %v2601 = vrot.slane %v2596, %v2600
        %v2603 = vadd.f32 %v2594, %v2601
        %v2604 = vadd.f32 %v2595, %v2601
        %2605 = vst [vmem:[#allocation2] sm:$0xff] %v2603
        %2606 = vst [vmem:[#allocation2 + $0x8] sm:$0xff] %v2604
        %p2607 = scmp.eq.s32.totalorder %s50, 5
        // Predicated region
        $region117: #{tpu_custom_call.1} parent=71 // pred_check
          %p2608 = pneg %p2607
        $region118: #{tpu_custom_call.1} parent=71 // pred_check_branch
          %2610 = sbr.rel (%p2608) target = $region120
        $region119: #{tpu_custom_call.1} parent=71 // pred_region
          %2611 = vst [vmem:[%s829] sm:$0xff] %v2603
          %2612 = vst [vmem:[%s829 + $0x8] sm:$0xff] %v2604
        $region120: #{tpu_custom_call.1} parent=71 // pred_fallthru
          _
        %s2613 = sand.u32 %s403, 1
        %s2614 = scalar_lea.sflag [#allocation5], %s2613
        %s2615 = sand.u32 %s403, 1
        %s2616 = smul.addr %s2615, 16
        %s2617 = scalar_lea.vmem [#allocation20], %s2616
        // Predicated region
        $region121: #{tpu_custom_call.1} parent=71 // pred_check
          %p2618 = pneg %p413
        $region122: #{tpu_custom_call.1} parent=71 // pred_check_branch
          %2620 = sbr.rel (%p2618) target = $region124
        $region123: #{tpu_custom_call.1} parent=71 // pred_region
          %s2622 = ssub.s32 256, 256
          %2623 = vsyncadd %s2614, %s2622
          %s2624 = smul.addr %s49, 2
          %s2625 = smul.addr %s2624, 128
          %s2626 = scalar_lea.hbm %s13, %s2625
          %s2627 = sshll.u32 %s2617, 4
          %s2628 = int_to_ptr.vmem [resolvable:$true] %s2627
          %2633 = dma.vmem_to_hbm [thread:$0]  %s2628, 256, %s2626, %s2614, 128, 128, 8
        $region124: #{tpu_custom_call.1} parent=71 // pred_fallthru
          _
      $region72: #{tpu_custom_call.1} parent=5 // pred_fallthru
        _
      %p2634 = scmp.le.s32.totalorder 2, %s40
      // Predicated region
      $region125: #{tpu_custom_call.1} parent=5 // pred_check
        %p2635 = pneg %p2634
      $region126: #{tpu_custom_call.1} parent=5 // pred_check_branch
        %2637 = sbr.rel (%p2635) target = $region128
      $region127: #{tpu_custom_call.1} parent=5 // pred_region
        %s2638 = ssub.s32 %s40, 2
        // Predicated region
        $region129: #{tpu_custom_call.1} parent=127 // pred_check
          %p2639 = pneg %p419
        $region130: #{tpu_custom_call.1} parent=127 // pred_check_branch
          %2641 = sbr.rel (%p2639) target = $region132
        $region131: #{tpu_custom_call.1} parent=127 // pred_region
          %s2642 = sand.u32 %s404, 1
          %s2643 = scalar_lea.sflag [#allocation5], %s2642
          %s2644 = sand.u32 %s404, 1
          %s2645 = smul.addr %s2644, 16
          %s2646 = scalar_lea.vmem [#allocation20], %s2645
          %2647 = dma.done %s2643, 256
        $region132: #{tpu_custom_call.1} parent=127 // pred_fallthru
          _
      $region128: #{tpu_custom_call.1} parent=5 // pred_fallthru
        _
    $region6: #{tpu_custom_call.1} parent=1 // loop_footer
      %s44 = sadd.s32 1, %s40
    $region7: #{tpu_custom_call.1} parent=1 // loop_footer_branch
      %39 = sbr.rel target = $region3
    $region8: #{tpu_custom_call.1} parent=1 // loop_exit
      _
    %2648 = vsyncpa [#allocation4], 1
    %s2649 = scalar_lea.sflag [#allocation4], 1
    %2650 = vsyncpa %s2649, 1
    %2651 = vsyncpa [#allocation7], 1
    %s2652 = scalar_lea.sflag [#allocation7], 1
    %2653 = vsyncpa %s2652, 1
    %2654 = vsyncpa [#allocation10], 1
    %s2655 = scalar_lea.sflag [#allocation10], 1
    %2656 = vsyncpa %s2655, 1
    %2657 = vsyncpa [#allocation13], 1
    %s2658 = scalar_lea.sflag [#allocation13], 1
    %2659 = vsyncpa %s2658, 1
    %2660 = vsyncpa [#allocation16], 1
    %s2661 = scalar_lea.sflag [#allocation16], 1
    %2662 = vsyncpa %s2661, 1
    %2663 = vsyncpa [#allocation19], 1
    %s2664 = scalar_lea.sflag [#allocation19], 1
    %2665 = vsyncpa %s2664, 1
    %2666 = vsyncpa [#allocation5], 1
    %s2667 = scalar_lea.sflag [#allocation5], 1
    %2668 = vsyncpa %s2667, 1

</llo_original>
